<compile_context>
chip_gen: v6e
topology: v6e:2x2x1
jax: 0.10.0
libtpu: 0.0.40
codegen_flags: <defaults>
</compile_context>

<pallas_src>
import jax
import jax.numpy as jnp
from jax.experimental import pallas as pl
from jax.experimental.pallas import tpu as pltpu

# ----- module hyper-parameters (synthetic "args" / clip_model dims) ----------
CTX_DIM = 512        # clip_model.ln_final.weight.shape[0]
VIS_DIM = 768        # visual width: proj / txt2img output dim
IMG_DIM = 512        # Img2Token embed_dim = middle_dim = output_dim
SEQ_LEN = 77         # CLIP context length
N_CTX   = 3          # args.maple_n_ctx
DEPTH   = 3          # args.maple_prompt_depth (txt2img=True branch)
VOCAB   = 1000       # synthetic vocabulary for token_embedding
N_MLP_LAYERS = 3     # Img2Token: 2x (Linear+Dropout+ReLU) + fc_out Linear


# ---------------------------------------------------------------------------
# Fused, staged kernel.
#   grid step d:
#     - Img2Token layer d on the running activation (kept in the imgtok output
#       ref, which stays VMEM-resident thanks to its constant out index_map)
#     - 512->768 projection d:  row d of prompt_stack @ row d of proj_w_stack
#       (d=0 -> self.proj(ctx), d>=1 -> compound_prompt_projections[d-1])
# ---------------------------------------------------------------------------
def _prompt_learner_kernel(x_ref, wmlp_ref, bmlp_ref, prm_ref, wproj_ref, bproj_ref,
                           imgtok_ref, proj_ref):
    d = pl.program_id(0)
    bf16 = jnp.bfloat16
    f32 = jnp.float32

    # --- Img2Token: (Linear -> Dropout(eval: identity) -> ReLU) x2, then fc_out ---
    # TODO(synk): dropout omitted (eval-mode / inference forward pass -> identity).
    @pl.when(d == 0)
    def _():
        imgtok_ref[...] = x_ref[...]          # seed the running activation buffer

    @pl.when(d < N_MLP_LAYERS)
    def _():
        h = jnp.dot(imgtok_ref[...].astype(bf16), wmlp_ref[0],
                    preferred_element_type=f32) + bmlp_ref[0]
        # ReLU on the two hidden layers only; fc_out (last stage) has none.
        h = jnp.where(d < N_MLP_LAYERS - 1, jnp.maximum(h, 0.0), h)
        imgtok_ref[...] = h.astype(imgtok_ref.dtype)

    # --- 512->768 projection group (one per stage) ---
    @pl.when(d < DEPTH)
    def _():
        y = jnp.dot(prm_ref[0].astype(bf16), wproj_ref[0],
                    preferred_element_type=f32) + bproj_ref[0]
        proj_ref[0] = y.astype(proj_ref.dtype)


def prompt_learner_pallas(x, mlp_w, mlp_b, prompt_stack, proj_w, proj_b):
    """One staged launch:
         x:(B,512)                     -> img_tok:(B,512)
         prompt_stack:(DEPTH,3,512)    -> proj_all:(DEPTH,3,768)
       where proj_all[0] = proj(ctx) and proj_all[1:] = visual_deep_prompts."""
    B = x.shape[0]
    n_stages = max(N_MLP_LAYERS, DEPTH)

    mlp_map = lambda d: (jnp.minimum(d, N_MLP_LAYERS - 1), 0, 0)
    proj_map = lambda d: (jnp.minimum(d, DEPTH - 1), 0, 0)

    flops = 2 * (B * IMG_DIM * IMG_DIM * N_MLP_LAYERS
                 + DEPTH * N_CTX * CTX_DIM * VIS_DIM)
    bytes_accessed = (x.nbytes + mlp_w.nbytes + mlp_b.nbytes + prompt_stack.nbytes
                      + proj_w.nbytes + proj_b.nbytes
                      + B * IMG_DIM * 4 + DEPTH * N_CTX * VIS_DIM * 4)

    out_shapes = (
        jax.ShapeDtypeStruct((B, IMG_DIM), jnp.float32),
        jax.ShapeDtypeStruct((DEPTH, N_CTX, VIS_DIM), jnp.float32),
    )
    return pl.pallas_call(
        _prompt_learner_kernel,
        out_shape=out_shapes,
        grid=(n_stages,),
        in_specs=[
            pl.BlockSpec((B, IMG_DIM), lambda d: (0, 0)),             # x (tiny, resident)
            pl.BlockSpec((1, IMG_DIM, IMG_DIM), mlp_map),             # Img2Token W, staged
            pl.BlockSpec((1, 1, IMG_DIM), mlp_map),                   # Img2Token b, staged
            pl.BlockSpec((1, N_CTX, CTX_DIM), proj_map),              # ctx / compound prompt d
            pl.BlockSpec((1, CTX_DIM, VIS_DIM), proj_map),            # projection W, staged
            pl.BlockSpec((1, 1, VIS_DIM), proj_map),                  # projection b, staged
        ],
        out_specs=(
            pl.BlockSpec((B, IMG_DIM), lambda d: (0, 0)),             # img_tok (resident acc)
            pl.BlockSpec((1, N_CTX, VIS_DIM), proj_map),              # proj_all slice d
        ),
        compiler_params=pltpu.CompilerParams(
            dimension_semantics=("arbitrary",),                       # MLP chain is sequential
            vmem_limit_bytes=32 * 1024 * 1024),
        cost_estimate=pl.CostEstimate(
            flops=flops, transcendentals=0, bytes_accessed=bytes_accessed),
    )(x, mlp_w, mlp_b, prompt_stack, proj_w, proj_b)


# ---------------------------------------------------------------------------
# Parameter init (deterministic, synthetic — mirrors __init__ shapes), with all
# host-side stacking / bias reshaping done ONCE here (not per forward).
# ---------------------------------------------------------------------------
def init_params(key):
    ks = jax.random.split(key, 10)
    p = {}
    # row 0 = self.ctx, rows 1.. = compound_prompts_text; all normal(std=0.02), f32.
    p["prompt_stack"] = 0.02 * jax.random.normal(
        ks[0], (DEPTH, N_CTX, CTX_DIM), jnp.float32)
    # Img2Token: Linear(512,512) x2 (+ReLU) then fc_out Linear(512,512).
    s = 1.0 / (IMG_DIM ** 0.5)
    p["mlp_w_stack"] = (s * jax.random.normal(
        ks[1], (N_MLP_LAYERS, IMG_DIM, IMG_DIM), jnp.float32)).astype(jnp.bfloat16)
    p["mlp_b_stack"] = 0.01 * jax.random.normal(
        ks[2], (N_MLP_LAYERS, 1, IMG_DIM), jnp.float32)
    # row 0 = self.proj, rows 1.. = compound_prompt_projections (_get_clones ->
    # identical at init, but stored per-depth so diverged trained clones also work).
    sp = 1.0 / (CTX_DIM ** 0.5)
    proj0_w = sp * jax.random.normal(ks[3], (CTX_DIM, VIS_DIM), jnp.float32)
    t2i_w = sp * jax.random.normal(ks[4], (CTX_DIM, VIS_DIM), jnp.float32)
    p["proj_w_stack"] = jnp.stack([proj0_w] + [t2i_w] * (DEPTH - 1), 0).astype(jnp.bfloat16)
    proj0_b = 0.01 * jax.random.normal(ks[5], (1, VIS_DIM), jnp.float32)
    t2i_b = 0.01 * jax.random.normal(ks[6], (1, VIS_DIM), jnp.float32)
    p["proj_b_stack"] = jnp.stack([proj0_b] + [t2i_b] * (DEPTH - 1), 0)
    # clip_model.token_embedding table + synthetic tokenized "prompt_prefix + resemblance".
    # TODO(synk): clip.tokenize (string tokenization) has no numeric equivalent; synthetic ids.
    p["token_embedding"] = 0.02 * jax.random.normal(ks[7], (VOCAB, CTX_DIM), jnp.float32)
    p["tokenized_prompts"] = jax.random.randint(ks[8], (1, SEQ_LEN), 0, VOCAB, dtype=jnp.int32)
    emb = jnp.take(p["token_embedding"], p["tokenized_prompts"], axis=0)   # (1, 77, ctx_dim)
    p["token_prefix"] = emb[:, :1, :]              # SOS embedding
    p["token_suffix"] = emb[:, 1 + N_CTX:, :]      # unused on this branch, kept for parity
    return p


# ---------------------------------------------------------------------------
# Forward (text_inputs is not None, fixed_imgfeats is not None, args.txt2img=True)
# ---------------------------------------------------------------------------
def forward(params, text_inputs, fixed_imgfeats):
    prompt_stack = params["prompt_stack"]            # (DEPTH, n_ctx, 512)
    ctx = prompt_stack[0]                            # (n_ctx, ctx_dim)
    prefix = params["token_prefix"]                  # (1, 1, ctx_dim)
    bsz = text_inputs.shape[0]

    # clip_model.token_embedding(text_inputs): pure gather (glue, plain JAX)
    text_embedding = jnp.take(params["token_embedding"], text_inputs, axis=0)  # (B,77,D)

    # single fused/staged Pallas launch: Img2Token MLP + proj(ctx) + all t2i projections
    image_token_embedding, proj_all = prompt_learner_pallas(
        fixed_imgfeats,
        params["mlp_w_stack"], params["mlp_b_stack"],
        prompt_stack, params["proj_w_stack"], params["proj_b_stack"])

    # construct_prompts: cat([prefix, ctx, image_token, text_embedding[:,1:76-n_ctx]], dim=1)
    prompts = jnp.concatenate([
        jnp.broadcast_to(prefix, (bsz, 1, CTX_DIM)),
        jnp.broadcast_to(ctx[None], (bsz, N_CTX, CTX_DIM)),
        image_token_embedding.reshape(bsz, 1, CTX_DIM),
        text_embedding[:, 1:76 - N_CTX, :],
    ], axis=1)                                       # (B, 77, ctx_dim)

    # txt2img compound-prompt projections (already computed in the fused kernel)
    visual_deep_prompts = [proj_all[1 + i] for i in range(DEPTH - 1)]     # (n_ctx, 768) each
    compound_prompts_text = [prompt_stack[1 + i] for i in range(DEPTH - 1)]

    # construct_token: cat([init_token.expand(bsz)[:, :5], text_inputs[:, 1:73]], dim=1)
    tokenized_prompts = jnp.concatenate([
        jnp.broadcast_to(params["tokenized_prompts"], (bsz, SEQ_LEN))[:, :5],
        text_inputs[:, 1:73],
    ], axis=1)                                       # (B, 77)

    # self.proj(shared_ctx): shared_ctx = prompts[:, 1:1+n_ctx, :] is exactly the batch
    # broadcast of ctx, so proj(ctx) was computed once in the kernel and broadcast here.
    proj_shared = jnp.broadcast_to(proj_all[0][None], (bsz, N_CTX, VIS_DIM))

    return (prompts, tokenized_prompts, proj_shared,
            compound_prompts_text, visual_deep_prompts)


# ---------------------------------------------------------------------------
if __name__ == "__main__":
    key = jax.random.PRNGKey(0)
    pkey, tkey, ikey = jax.random.split(key, 3)

    params = init_params(pkey)

    bsz = 2
    text_inputs = jax.random.randint(tkey, (bsz, SEQ_LEN), 0, VOCAB, dtype=jnp.int32)
    fixed_imgfeats = jax.random.normal(ikey, (bsz, IMG_DIM), dtype=jnp.float32)

    outs = jax.jit(forward)(params, text_inputs, fixed_imgfeats)
    outs = jax.block_until_ready(outs)

    prompts, tokenized_prompts, proj_shared, cpt, vdp = outs
    assert prompts.shape == (bsz, SEQ_LEN, CTX_DIM)
    assert tokenized_prompts.shape == (bsz, SEQ_LEN)
    assert proj_shared.shape == (bsz, N_CTX, VIS_DIM)
    assert len(cpt) == DEPTH - 1 and cpt[0].shape == (N_CTX, CTX_DIM)
    assert len(vdp) == DEPTH - 1 and vdp[0].shape == (N_CTX, VIS_DIM)
    assert bool(jnp.all(jnp.isfinite(prompts))) and bool(jnp.all(jnp.isfinite(proj_shared)))

    print("KERNEL_OK")
</pallas_src>

<mosaic_0001>
module attributes {stable_mosaic.version = 11 : i64} {
  func.func @_prompt_learner_kernel(%arg0: i32, %arg1: memref<2x512xf32, #tpu.memory_space<vmem>>, %arg2: memref<1x512x512xbf16, #tpu.memory_space<vmem>>, %arg3: memref<1x1x512xf32, #tpu.memory_space<vmem>>, %arg4: memref<1x3x512xf32, #tpu.memory_space<vmem>>, %arg5: memref<1x512x768xbf16, #tpu.memory_space<vmem>>, %arg6: memref<1x1x768xf32, #tpu.memory_space<vmem>>, %arg7: memref<2x512xf32, #tpu.memory_space<vmem>>, %arg8: memref<1x3x768xf32, #tpu.memory_space<vmem>>) attributes {dimension_semantics = [#tpu.dimension_semantics<arbitrary>], iteration_bounds = array<i64: 3>, scalar_prefetch = 0 : i64, scratch_operands = 0 : i64, tpu.core_type = #tpu.core_type<tc>, window_params = [{pipeline_mode = #tpu.pipeline_mode<synchronous>, transform_indices = @transform_0, window_bounds = array<i64: 2, 512>}, {transform_indices = @transform_1, window_bounds = array<i64: 1, 512, 512>}, {transform_indices = @transform_2, window_bounds = array<i64: 1, 1, 512>}, {transform_indices = @transform_3, window_bounds = array<i64: 1, 3, 512>}, {transform_indices = @transform_4, window_bounds = array<i64: 1, 512, 768>}, {transform_indices = @transform_5, window_bounds = array<i64: 1, 1, 768>}, {pipeline_mode = #tpu.pipeline_mode<synchronous>, transform_indices = @transform_6, window_bounds = array<i64: 2, 512>}, {transform_indices = @transform_7, window_bounds = array<i64: 1, 3, 768>}]} {
    %c0_i32 = arith.constant 0 : i32
    %0 = arith.cmpi eq, %arg0, %c0_i32 : i32
    %1 = arith.extui %0 : i1 to i32
    %c0_i32_0 = arith.constant 0 : i32
    %2 = arith.cmpi ne, %1, %c0_i32_0 : i32
    scf.if %2 {
      %c0 = arith.constant 0 : index
      %c0_4 = arith.constant 0 : index
      %9 = vector.load %arg1[%c0, %c0_4] : memref<2x512xf32, #tpu.memory_space<vmem>>, vector<2x512xf32>
      %c0_5 = arith.constant 0 : index
      %c0_6 = arith.constant 0 : index
      %10 = vector.load %arg7[%c0_5, %c0_6] : memref<2x512xf32, #tpu.memory_space<vmem>>, vector<2x512xf32>
      tpu.vector_store %arg7[%c0_5, %c0_6], %9 {strides = array<i32>} : memref<2x512xf32, #tpu.memory_space<vmem>>, vector<2x512xf32>,
    } else {
    }
    %c3_i32 = arith.constant 3 : i32
    %3 = arith.cmpi slt, %arg0, %c3_i32 : i32
    %4 = arith.extui %3 : i1 to i32
    %c0_i32_1 = arith.constant 0 : i32
    %5 = arith.cmpi ne, %4, %c0_i32_1 : i32
    scf.if %5 {
      %c0 = arith.constant 0 : index
      %c0_4 = arith.constant 0 : index
      %9 = vector.load %arg7[%c0, %c0_4] : memref<2x512xf32, #tpu.memory_space<vmem>>, vector<2x512xf32>
      %10 = arith.truncf %9 : vector<2x512xf32> to vector<2x512xbf16>
      %c0_5 = arith.constant 0 : index
      %c0_6 = arith.constant 0 : index
      %c0_7 = arith.constant 0 : index
      %11 = vector.load %arg2[%c0_5, %c0_6, %c0_7] : memref<1x512x512xbf16, #tpu.memory_space<vmem>>, vector<1x512x512xbf16>
      %12 = vector.shape_cast %11 : vector<1x512x512xbf16> to vector<512x512xbf16>
      %cst = arith.constant dense<0.000000e+00> : vector<2x512xf32>
      %13 = tpu.matmul %10, %12, %cst {dimension_numbers = #tpu.dot_dimension_numbers<[1], [0], [0], [1], [0, 0, 1, 1], [], []>} : vector<2x512xbf16>, vector<512x512xbf16>, vector<2x512xf32> -> vector<2x512xf32>
      %c0_8 = arith.constant 0 : index
      %c0_9 = arith.constant 0 : index
      %c0_10 = arith.constant 0 : index
      %14 = vector.load %arg3[%c0_8, %c0_9, %c0_10] : memref<1x1x512xf32, #tpu.memory_space<vmem>>, vector<1x1x512xf32>
      %15 = vector.shape_cast %14 : vector<1x1x512xf32> to vector<1x512xf32>
      %16 = vector.broadcast %15 : vector<1x512xf32> to vector<2x512xf32>
      %17 = arith.addf %13, %16 : vector<2x512xf32>
      %c2_i32 = arith.constant 2 : i32
      %18 = arith.cmpi slt, %arg0, %c2_i32 : i32
      %cst_11 = arith.constant 0.000000e+00 : f32
      %19 = vector.broadcast %cst_11 : f32 to vector<2x512xf32>
      %20 = arith.maximumf %17, %19 : vector<2x512xf32>
      %21 = arith.select %18, %20, %17 : vector<2x512xf32>
      %c0_12 = arith.constant 0 : index
      %c0_13 = arith.constant 0 : index
      %22 = vector.load %arg7[%c0_12, %c0_13] : memref<2x512xf32, #tpu.memory_space<vmem>>, vector<2x512xf32>
      tpu.vector_store %arg7[%c0_12, %c0_13], %21 {strides = array<i32>} : memref<2x512xf32, #tpu.memory_space<vmem>>, vector<2x512xf32>,
    } else {
    }
    %c3_i32_2 = arith.constant 3 : i32
    %6 = arith.cmpi slt, %arg0, %c3_i32_2 : i32
    %7 = arith.extui %6 : i1 to i32
    %c0_i32_3 = arith.constant 0 : i32
    %8 = arith.cmpi ne, %7, %c0_i32_3 : i32
    scf.if %8 {
      %c0 = arith.constant 0 : index
      %c0_4 = arith.constant 0 : index
      %c0_5 = arith.constant 0 : index
      %9 = vector.load %arg4[%c0, %c0_4, %c0_5] : memref<1x3x512xf32, #tpu.memory_space<vmem>>, vector<1x3x512xf32>
      %10 = vector.shape_cast %9 : vector<1x3x512xf32> to vector<3x512xf32>
      %11 = arith.truncf %10 : vector<3x512xf32> to vector<3x512xbf16>
      %c0_6 = arith.constant 0 : index
      %c0_7 = arith.constant 0 : index
      %c0_8 = arith.constant 0 : index
      %12 = vector.load %arg5[%c0_6, %c0_7, %c0_8] : memref<1x512x768xbf16, #tpu.memory_space<vmem>>, vector<1x512x768xbf16>
      %13 = vector.shape_cast %12 : vector<1x512x768xbf16> to vector<512x768xbf16>
      %cst = arith.constant dense<0.000000e+00> : vector<3x768xf32>
      %14 = tpu.matmul %11, %13, %cst {dimension_numbers = #tpu.dot_dimension_numbers<[1], [0], [0], [1], [0, 0, 1, 1], [], []>} : vector<3x512xbf16>, vector<512x768xbf16>, vector<3x768xf32> -> vector<3x768xf32>
      %c0_9 = arith.constant 0 : index
      %c0_10 = arith.constant 0 : index
      %c0_11 = arith.constant 0 : index
      %15 = vector.load %arg6[%c0_9, %c0_10, %c0_11] : memref<1x1x768xf32, #tpu.memory_space<vmem>>, vector<1x1x768xf32>
      %16 = vector.shape_cast %15 : vector<1x1x768xf32> to vector<1x768xf32>
      %17 = vector.broadcast %16 : vector<1x768xf32> to vector<3x768xf32>
      %18 = arith.addf %14, %17 : vector<3x768xf32>
      %c0_12 = arith.constant 0 : index
      %c0_13 = arith.constant 0 : index
      %c0_14 = arith.constant 0 : index
      %19 = vector.load %arg8[%c0_12, %c0_13, %c0_14] : memref<1x3x768xf32, #tpu.memory_space<vmem>>, vector<1x3x768xf32>
      %20 = vector.shape_cast %19 : vector<1x3x768xf32> to vector<3x768xf32>
      %21 = vector.shape_cast %18 : vector<3x768xf32> to vector<1x3x768xf32>
      tpu.vector_store %arg8[%c0_12, %c0_13, %c0_14], %21 {strides = array<i32>} : memref<1x3x768xf32, #tpu.memory_space<vmem>>, vector<1x3x768xf32>,
    } else {
    }
    return
  }
  func.func @transform_0(%arg0: i32) -> (i32, i32) {
    %c0_i32 = arith.constant 0 : i32
    %c0_i32_0 = arith.constant 0 : i32
    %c0_i32_1 = arith.constant 0 : i32
    return %c0_i32, %c0_i32_0 : i32, i32
  }
  func.func @transform_1(%arg0: i32) -> (i32, i32, i32) {
    %c2_i32 = arith.constant 2 : i32
    %0 = arith.minsi %arg0, %c2_i32 : i32
    %c0_i32 = arith.constant 0 : i32
    %c0_i32_0 = arith.constant 0 : i32
    %c0_i32_1 = arith.constant 0 : i32
    return %0, %c0_i32, %c0_i32_0 : i32, i32, i32
  }
  func.func @transform_2(%arg0: i32) -> (i32, i32, i32) {
    %c2_i32 = arith.constant 2 : i32
    %0 = arith.minsi %arg0, %c2_i32 : i32
    %c0_i32 = arith.constant 0 : i32
    %c0_i32_0 = arith.constant 0 : i32
    %c0_i32_1 = arith.constant 0 : i32
    return %0, %c0_i32, %c0_i32_0 : i32, i32, i32
  }
  func.func @transform_3(%arg0: i32) -> (i32, i32, i32) {
    %c2_i32 = arith.constant 2 : i32
    %0 = arith.minsi %arg0, %c2_i32 : i32
    %c0_i32 = arith.constant 0 : i32
    %c0_i32_0 = arith.constant 0 : i32
    %c0_i32_1 = arith.constant 0 : i32
    return %0, %c0_i32, %c0_i32_0 : i32, i32, i32
  }
  func.func @transform_4(%arg0: i32) -> (i32, i32, i32) {
    %c2_i32 = arith.constant 2 : i32
    %0 = arith.minsi %arg0, %c2_i32 : i32
    %c0_i32 = arith.constant 0 : i32
    %c0_i32_0 = arith.constant 0 : i32
    %c0_i32_1 = arith.constant 0 : i32
    return %0, %c0_i32, %c0_i32_0 : i32, i32, i32
  }
  func.func @transform_5(%arg0: i32) -> (i32, i32, i32) {
    %c2_i32 = arith.constant 2 : i32
    %0 = arith.minsi %arg0, %c2_i32 : i32
    %c0_i32 = arith.constant 0 : i32
    %c0_i32_0 = arith.constant 0 : i32
    %c0_i32_1 = arith.constant 0 : i32
    return %0, %c0_i32, %c0_i32_0 : i32, i32, i32
  }
  func.func @transform_6(%arg0: i32) -> (i32, i32) {
    %c0_i32 = arith.constant 0 : i32
    %c0_i32_0 = arith.constant 0 : i32
    %c0_i32_1 = arith.constant 0 : i32
    return %c0_i32, %c0_i32_0 : i32, i32
  }
  func.func @transform_7(%arg0: i32) -> (i32, i32, i32) {
    %c2_i32 = arith.constant 2 : i32
    %0 = arith.minsi %arg0, %c2_i32 : i32
    %c0_i32 = arith.constant 0 : i32
    %c0_i32_0 = arith.constant 0 : i32
    %c0_i32_1 = arith.constant 0 : i32
    return %0, %c0_i32, %c0_i32_0 : i32, i32, i32
  }
}

</mosaic_0001>

<llo_original>
// kernel: forward.1
$region0: #{forward.1}
  #allocation0 [shape = 'u32[]', space=smem, size = 0x4, offset = 0x4, fixed_abs, tag = 'smem constant byte address 0x4 - core index']
  #allocation1 [shape = 'u32[144,128]{1,0:T(1,128)}', space=vmem, size = 0x12000, scoped, tag = 'internal scratch']
  %s0 = inlined_call_operand.vmem [shape: f32[2,512], index: 0, kind: input, shape index: {}]
  %s1 = inlined_call_operand.vmem [shape: bf16[3,512,512], index: 1, kind: input, shape index: {}]
  %s2 = inlined_call_operand.vmem [shape: f32[3,1,512], index: 2, kind: input, shape index: {}]
  %s3 = inlined_call_operand.vmem [shape: f32[3,3,512], index: 3, kind: input, shape index: {}]
  %s4 = inlined_call_operand.vmem [shape: bf16[3,512,768], index: 4, kind: input, shape index: {}]
  %s5 = inlined_call_operand.vmem [shape: f32[3,1,768], index: 5, kind: input, shape index: {}]
  %s6 = inlined_call_operand.vmem [shape: f32[2,512], index: 6, kind: output, shape index: {0}]
  %s7 = inlined_call_operand.vmem [shape: f32[3,3,768], index: 7, kind: output, shape index: {1}]
  %8 = xla_tuple %s6, %s7
  %s9 = sld [smem:[#allocation0]]
  $region73: #{forward.1} parent=0
    _
  %s11 = ssub.s32 1, %s9
  %s12 = scalar_select 0, %s11, %s9
  loop: start=0, step=1, limit=5
  $region2: #{forward.1} parent=0 // loop_pre_header
    _
  $region3: #{forward.1} parent=0 // loop_header
    %s14 = sphi 0, %s18
    %p15 = scmp.ge.s32.totalorder %s14, 5
    %s22 = sphi 0, %s22
    %s24 = sphi 0, %s22
    %s25 = sphi 0, %s24
    %s39 = sphi 0, %s25
    %s49 = sphi 0, %s51
    %s52 = sphi 0, %s49
    %s53 = sphi 0, %s52
    %s69 = sphi 0, %s53
    %s79 = sphi 0, %s81
    %s82 = sphi 0, %s79
    %s83 = sphi 0, %s82
    %s99 = sphi 0, %s83
    %s109 = sphi 0, %s111
    %s112 = sphi 0, %s109
    %s113 = sphi 0, %s112
    %s129 = sphi 0, %s113
    %s139 = sphi 0, %s141
    %s142 = sphi 0, %s139
    %s143 = sphi 0, %s142
    %s159 = sphi 0, %s143
    %s169 = sphi 0, %s171
    %s172 = sphi 0, %s169
    %s173 = sphi 0, %s172
    %s189 = sphi 0, %s173
    %s193 = sphi 0, %s193
    %s195 = sphi 0, %s193
    %s196 = sphi 0, %s195
    %s210 = sphi 0, %s196
    %s220 = sphi 0, %s222
    %s223 = sphi 0, %s220
    %s224 = sphi 0, %s223
    %s240 = sphi 0, %s224
  $region4: #{forward.1} parent=0 // loop_header_branch
    %17 = sbr.rel (%p15) target = $region8
  $region5: #{forward.1} parent=0 // loop_body
    %s19 = ssub.s32 %s14, 1
    %s20 = ssub.s32 %s14, 2
    %s21 = sadd.s32 %s14, 1
    %s23 = sadd.s32 %s22, 1
    %p26 = scmp.eq.s32.totalorder %s14, 2
    %p27 = scmp.ne.s32.totalorder %s22, %s24
    %p28 = scmp.eq.s32.totalorder %s14, 0
    %p29 = por %p27, %p28
    %p30 = scmp.ne.s32.totalorder %s22, %s24
    %p31 = scmp.eq.s32.totalorder %s19, 2
    %p32 = por %p30, %p31
    %p33 = scmp.ne.s32.totalorder %s24, %s25
    %p34 = scmp.eq.s32.totalorder %s19, 0
    %p35 = por %p33, %p34
    %p36 = scmp.ne.s32.totalorder %s24, %s25
    %p37 = scmp.eq.s32.totalorder %s20, 2
    %p38 = por %p36, %p37
    %p40 = scmp.ne.s32.totalorder %s25, %s39
    %p41 = scmp.eq.s32.totalorder %s20, 0
    %p42 = por %p40, %p41
    %p43 = scmp.lt.s32.totalorder %s14, 2
    %s44 = scalar_select %p43, %s14, 2
    %p45 = scmp.lt.s32.totalorder %s21, 2
    %s46 = scalar_select %p45, %s21, 2
    %s47 = ssub.s32 %s44, %s46
    %p48 = scmp.eq.s32.totalorder %s47, 0
    %s50 = sadd.s32 %s49, 1
    %s51 = scalar_select %p48, %s49, %s50
    %p54 = pneg %p48
    %p55 = scmp.eq.s32.totalorder %s14, 2
    %p56 = por %p54, %p55
    %p57 = scmp.ne.s32.totalorder %s49, %s52
    %p58 = scmp.eq.s32.totalorder %s14, 0
    %p59 = por %p57, %p58
    %p60 = scmp.ne.s32.totalorder %s49, %s52
    %p61 = scmp.eq.s32.totalorder %s19, 2
    %p62 = por %p60, %p61
    %p63 = scmp.ne.s32.totalorder %s52, %s53
    %p64 = scmp.eq.s32.totalorder %s19, 0
    %p65 = por %p63, %p64
    %p66 = scmp.ne.s32.totalorder %s52, %s53
    %p67 = scmp.eq.s32.totalorder %s20, 2
    %p68 = por %p66, %p67
    %p70 = scmp.ne.s32.totalorder %s53, %s69
    %p71 = scmp.eq.s32.totalorder %s20, 0
    %p72 = por %p70, %p71
    %p73 = scmp.lt.s32.totalorder %s14, 2
    %s74 = scalar_select %p73, %s14, 2
    %p75 = scmp.lt.s32.totalorder %s21, 2
    %s76 = scalar_select %p75, %s21, 2
    %s77 = ssub.s32 %s74, %s76
    %p78 = scmp.eq.s32.totalorder %s77, 0
    %s80 = sadd.s32 %s79, 1
    %s81 = scalar_select %p78, %s79, %s80
    %p84 = pneg %p78
    %p85 = scmp.eq.s32.totalorder %s14, 2
    %p86 = por %p84, %p85
    %p87 = scmp.ne.s32.totalorder %s79, %s82
    %p88 = scmp.eq.s32.totalorder %s14, 0
    %p89 = por %p87, %p88
    %p90 = scmp.ne.s32.totalorder %s79, %s82
    %p91 = scmp.eq.s32.totalorder %s19, 2
    %p92 = por %p90, %p91
    %p93 = scmp.ne.s32.totalorder %s82, %s83
    %p94 = scmp.eq.s32.totalorder %s19, 0
    %p95 = por %p93, %p94
    %p96 = scmp.ne.s32.totalorder %s82, %s83
    %p97 = scmp.eq.s32.totalorder %s20, 2
    %p98 = por %p96, %p97
    %p100 = scmp.ne.s32.totalorder %s83, %s99
    %p101 = scmp.eq.s32.totalorder %s20, 0
    %p102 = por %p100, %p101
    %p103 = scmp.lt.s32.totalorder %s14, 2
    %s104 = scalar_select %p103, %s14, 2
    %p105 = scmp.lt.s32.totalorder %s21, 2
    %s106 = scalar_select %p105, %s21, 2
    %s107 = ssub.s32 %s104, %s106
    %p108 = scmp.eq.s32.totalorder %s107, 0
    %s110 = sadd.s32 %s109, 1
    %s111 = scalar_select %p108, %s109, %s110
    %p114 = pneg %p108
    %p115 = scmp.eq.s32.totalorder %s14, 2
    %p116 = por %p114, %p115
    %p117 = scmp.ne.s32.totalorder %s109, %s112
    %p118 = scmp.eq.s32.totalorder %s14, 0
    %p119 = por %p117, %p118
    %p120 = scmp.ne.s32.totalorder %s109, %s112
    %p121 = scmp.eq.s32.totalorder %s19, 2
    %p122 = por %p120, %p121
    %p123 = scmp.ne.s32.totalorder %s112, %s113
    %p124 = scmp.eq.s32.totalorder %s19, 0
    %p125 = por %p123, %p124
    %p126 = scmp.ne.s32.totalorder %s112, %s113
    %p127 = scmp.eq.s32.totalorder %s20, 2
    %p128 = por %p126, %p127
    %p130 = scmp.ne.s32.totalorder %s113, %s129
    %p131 = scmp.eq.s32.totalorder %s20, 0
    %p132 = por %p130, %p131
    %p133 = scmp.lt.s32.totalorder %s14, 2
    %s134 = scalar_select %p133, %s14, 2
    %p135 = scmp.lt.s32.totalorder %s21, 2
    %s136 = scalar_select %p135, %s21, 2
    %s137 = ssub.s32 %s134, %s136
    %p138 = scmp.eq.s32.totalorder %s137, 0
    %s140 = sadd.s32 %s139, 1
    %s141 = scalar_select %p138, %s139, %s140
    %p144 = pneg %p138
    %p145 = scmp.eq.s32.totalorder %s14, 2
    %p146 = por %p144, %p145
    %p147 = scmp.ne.s32.totalorder %s139, %s142
    %p148 = scmp.eq.s32.totalorder %s14, 0
    %p149 = por %p147, %p148
    %p150 = scmp.ne.s32.totalorder %s139, %s142
    %p151 = scmp.eq.s32.totalorder %s19, 2
    %p152 = por %p150, %p151
    %p153 = scmp.ne.s32.totalorder %s142, %s143
    %p154 = scmp.eq.s32.totalorder %s19, 0
    %p155 = por %p153, %p154
    %p156 = scmp.ne.s32.totalorder %s142, %s143
    %p157 = scmp.eq.s32.totalorder %s20, 2
    %p158 = por %p156, %p157
    %p160 = scmp.ne.s32.totalorder %s143, %s159
    %p161 = scmp.eq.s32.totalorder %s20, 0
    %p162 = por %p160, %p161
    %p163 = scmp.lt.s32.totalorder %s14, 2
    %s164 = scalar_select %p163, %s14, 2
    %p165 = scmp.lt.s32.totalorder %s21, 2
    %s166 = scalar_select %p165, %s21, 2
    %s167 = ssub.s32 %s164, %s166
    %p168 = scmp.eq.s32.totalorder %s167, 0
    %s170 = sadd.s32 %s169, 1
    %s171 = scalar_select %p168, %s169, %s170
    %p174 = pneg %p168
    %p175 = scmp.eq.s32.totalorder %s14, 2
    %p176 = por %p174, %p175
    %p177 = scmp.ne.s32.totalorder %s169, %s172
    %p178 = scmp.eq.s32.totalorder %s14, 0
    %p179 = por %p177, %p178
    %p180 = scmp.ne.s32.totalorder %s169, %s172
    %p181 = scmp.eq.s32.totalorder %s19, 2
    %p182 = por %p180, %p181
    %p183 = scmp.ne.s32.totalorder %s172, %s173
    %p184 = scmp.eq.s32.totalorder %s19, 0
    %p185 = por %p183, %p184
    %p186 = scmp.ne.s32.totalorder %s172, %s173
    %p187 = scmp.eq.s32.totalorder %s20, 2
    %p188 = por %p186, %p187
    %p190 = scmp.ne.s32.totalorder %s173, %s189
    %p191 = scmp.eq.s32.totalorder %s20, 0
    %p192 = por %p190, %p191
    %s194 = sadd.s32 %s193, 1
    %p197 = scmp.eq.s32.totalorder %s14, 2
    %p198 = scmp.ne.s32.totalorder %s193, %s195
    %p199 = scmp.eq.s32.totalorder %s14, 0
    %p200 = por %p198, %p199
    %p201 = scmp.ne.s32.totalorder %s193, %s195
    %p202 = scmp.eq.s32.totalorder %s19, 2
    %p203 = por %p201, %p202
    %p204 = scmp.ne.s32.totalorder %s195, %s196
    %p205 = scmp.eq.s32.totalorder %s19, 0
    %p206 = por %p204, %p205
    %p207 = scmp.ne.s32.totalorder %s195, %s196
    %p208 = scmp.eq.s32.totalorder %s20, 2
    %p209 = por %p207, %p208
    %p211 = scmp.ne.s32.totalorder %s196, %s210
    %p212 = scmp.eq.s32.totalorder %s20, 0
    %p213 = por %p211, %p212
    %p214 = scmp.lt.s32.totalorder %s14, 2
    %s215 = scalar_select %p214, %s14, 2
    %p216 = scmp.lt.s32.totalorder %s21, 2
    %s217 = scalar_select %p216, %s21, 2
    %s218 = ssub.s32 %s215, %s217
    %p219 = scmp.eq.s32.totalorder %s218, 0
    %s221 = sadd.s32 %s220, 1
    %s222 = scalar_select %p219, %s220, %s221
    %p225 = pneg %p219
    %p226 = scmp.eq.s32.totalorder %s14, 2
    %p227 = por %p225, %p226
    %p228 = scmp.ne.s32.totalorder %s220, %s223
    %p229 = scmp.eq.s32.totalorder %s14, 0
    %p230 = por %p228, %p229
    %p231 = scmp.ne.s32.totalorder %s220, %s223
    %p232 = scmp.eq.s32.totalorder %s19, 2
    %p233 = por %p231, %p232
    %p234 = scmp.ne.s32.totalorder %s223, %s224
    %p235 = scmp.eq.s32.totalorder %s19, 0
    %p236 = por %p234, %p235
    %p237 = scmp.ne.s32.totalorder %s223, %s224
    %p238 = scmp.eq.s32.totalorder %s20, 2
    %p239 = por %p237, %p238
    %p241 = scmp.ne.s32.totalorder %s224, %s240
    %p242 = scmp.eq.s32.totalorder %s20, 0
    %p243 = por %p241, %p242
    %p244 = scmp.le.s32.totalorder 1, %s14
    %p245 = scmp.lt.s32.totalorder %s14, 4
    %p246 = pnand %p244, %p245
    %p247 = pneg %p246
    // Predicated region
    $region9: #{forward.1} parent=5 // pred_check
      _
    $region10: #{forward.1} parent=5 // pred_check_branch
      %249 = sbr.rel (%p246) target = $region12
    $region11: #{forward.1} parent=5 // pred_region
      %s250 = ssub.s32 %s14, 1
      // Predicated region
      $region13: #{forward.1} parent=11 // pred_check
        %p251 = pneg %p35
      $region14: #{forward.1} parent=11 // pred_check_branch
        %253 = sbr.rel (%p251) target = $region16
      $region15: #{forward.1} parent=11 // pred_region
        _
      $region16: #{forward.1} parent=11 // pred_fallthru
        _
    $region12: #{forward.1} parent=5 // pred_fallthru
      _
    %p254 = scmp.lt.s32.totalorder %s14, 3
    // Predicated region
    $region17: #{forward.1} parent=5 // pred_check
      %p255 = pneg %p254
    $region18: #{forward.1} parent=5 // pred_check_branch
      %257 = sbr.rel (%p255) target = $region20
    $region19: #{forward.1} parent=5 // pred_region
      // Predicated region
      $region21: #{forward.1} parent=19 // pred_check
        %p258 = pneg %p59
      $region22: #{forward.1} parent=19 // pred_check_branch
        %260 = sbr.rel (%p258) target = $region24
      $region23: #{forward.1} parent=19 // pred_region
        %p261 = scmp.lt.s32.totalorder %s14, 2
        %s262 = scalar_select %p261, %s14, 2
        %p263 = scmp.lt.s32.totalorder %s262, 2
        %s264 = scalar_select %p263, %s262, 2
        %s265 = smul.addr %s264, 256
        %s266 = smul.addr %s265, 4
        %s267 = scalar_lea.vmem %s1, %s266
        %p268 = scmp.lt.s32.totalorder %s14, 2
        %s269 = scalar_select %p268, %s14, 2
      $region24: #{forward.1} parent=19 // pred_fallthru
        _
      // Predicated region
      $region25: #{forward.1} parent=19 // pred_check
        %p270 = pneg %p89
      $region26: #{forward.1} parent=19 // pred_check_branch
        %272 = sbr.rel (%p270) target = $region28
      $region27: #{forward.1} parent=19 // pred_region
        %p273 = scmp.lt.s32.totalorder %s14, 2
        %s274 = scalar_select %p273, %s14, 2
        %p275 = scmp.lt.s32.totalorder %s274, 2
        %s276 = scalar_select %p275, %s274, 2
        %s277 = smul.addr %s276, 4
        %s278 = scalar_lea.vmem %s2, %s277
        %p279 = scmp.lt.s32.totalorder %s14, 2
        %s280 = scalar_select %p279, %s14, 2
      $region28: #{forward.1} parent=19 // pred_fallthru
        _
      // Predicated region
      $region29: #{forward.1} parent=19 // pred_check
        %p281 = pneg %p119
      $region30: #{forward.1} parent=19 // pred_check_branch
        %283 = sbr.rel (%p281) target = $region32
      $region31: #{forward.1} parent=19 // pred_region
        %p284 = scmp.lt.s32.totalorder %s14, 2
        %s285 = scalar_select %p284, %s14, 2
        %p286 = scmp.lt.s32.totalorder %s285, 2
        %s287 = scalar_select %p286, %s285, 2
        %s288 = smul.addr %s287, 4
        %s289 = smul.addr %s288, 4
        %s290 = scalar_lea.vmem %s3, %s289
        %p291 = scmp.lt.s32.totalorder %s14, 2
        %s292 = scalar_select %p291, %s14, 2
      $region32: #{forward.1} parent=19 // pred_fallthru
        _
      // Predicated region
      $region33: #{forward.1} parent=19 // pred_check
        %p293 = pneg %p149
      $region34: #{forward.1} parent=19 // pred_check_branch
        %295 = sbr.rel (%p293) target = $region36
      $region35: #{forward.1} parent=19 // pred_region
        %p296 = scmp.lt.s32.totalorder %s14, 2
        %s297 = scalar_select %p296, %s14, 2
        %p298 = scmp.lt.s32.totalorder %s297, 2
        %s299 = scalar_select %p298, %s297, 2
        %s300 = smul.addr %s299, 384
        %s301 = smul.addr %s300, 4
        %s302 = scalar_lea.vmem %s4, %s301
        %p303 = scmp.lt.s32.totalorder %s14, 2
        %s304 = scalar_select %p303, %s14, 2
      $region36: #{forward.1} parent=19 // pred_fallthru
        _
      // Predicated region
      $region37: #{forward.1} parent=19 // pred_check
        %p305 = pneg %p179
      $region38: #{forward.1} parent=19 // pred_check_branch
        %307 = sbr.rel (%p305) target = $region40
      $region39: #{forward.1} parent=19 // pred_region
        %p308 = scmp.lt.s32.totalorder %s14, 2
        %s309 = scalar_select %p308, %s14, 2
        %p310 = scmp.lt.s32.totalorder %s309, 2
        %s311 = scalar_select %p310, %s309, 2
        %s312 = smul.addr %s311, 6
        %s313 = scalar_lea.vmem %s5, %s312
        %p314 = scmp.lt.s32.totalorder %s14, 2
        %s315 = scalar_select %p314, %s14, 2
      $region40: #{forward.1} parent=19 // pred_fallthru
        _
    $region20: #{forward.1} parent=5 // pred_fallthru
      _
    %p316 = scmp.le.s32.totalorder 1, %s14
    %p317 = scmp.lt.s32.totalorder %s14, 4
    %p318 = pnand %p316, %p317
    %p319 = pneg %p318
    // Predicated region
    $region41: #{forward.1} parent=5 // pred_check
      _
    $region42: #{forward.1} parent=5 // pred_check_branch
      %321 = sbr.rel (%p318) target = $region44
    $region43: #{forward.1} parent=5 // pred_region
      %s322 = ssub.s32 %s14, 1
      %p323 = pneg %p35
      %p324 = pneg %p32
      %p325 = scmp.lt.s32.totalorder %s19, 2
      %s326 = scalar_select %p325, %s19, 2
      %p327 = scmp.lt.s32.totalorder %s326, 2
      %s328 = scalar_select %p327, %s326, 2
      %s329 = smul.addr %s328, 256
      %s330 = smul.addr %s329, 4
      %s331 = scalar_lea.vmem %s1, %s330
      %p332 = pneg %p65
      %p333 = pneg %p62
      %p334 = scmp.lt.s32.totalorder %s19, 2
      %s335 = scalar_select %p334, %s19, 2
      %p336 = scmp.lt.s32.totalorder %s335, 2
      %s337 = scalar_select %p336, %s335, 2
      %s338 = smul.addr %s337, 4
      %s339 = scalar_lea.vmem %s2, %s338
      %p340 = pneg %p95
      %p341 = pneg %p92
      %p342 = scmp.lt.s32.totalorder %s19, 2
      %s343 = scalar_select %p342, %s19, 2
      %p344 = scmp.lt.s32.totalorder %s343, 2
      %s345 = scalar_select %p344, %s343, 2
      %s346 = smul.addr %s345, 4
      %s347 = smul.addr %s346, 4
      %s348 = scalar_lea.vmem %s3, %s347
      %p349 = pneg %p125
      %p350 = pneg %p122
      %p351 = scmp.lt.s32.totalorder %s19, 2
      %s352 = scalar_select %p351, %s19, 2
      %p353 = scmp.lt.s32.totalorder %s352, 2
      %s354 = scalar_select %p353, %s352, 2
      %s355 = smul.addr %s354, 384
      %s356 = smul.addr %s355, 4
      %s357 = scalar_lea.vmem %s4, %s356
      %p358 = pneg %p155
      %p359 = pneg %p152
      %p360 = scmp.lt.s32.totalorder %s19, 2
      %s361 = scalar_select %p360, %s19, 2
      %p362 = scmp.lt.s32.totalorder %s361, 2
      %s363 = scalar_select %p362, %s361, 2
      %s364 = smul.addr %s363, 6
      %s365 = scalar_lea.vmem %s5, %s364
      %p366 = pneg %p185
      %p367 = pneg %p182
      %p368 = pneg %p206
      %p369 = pneg %p203
      %p370 = pneg %p236
      %p371 = pneg %p233
      %p372 = scmp.lt.s32.totalorder %s19, 2
      %s373 = scalar_select %p372, %s19, 2
      %p374 = scmp.lt.s32.totalorder %s373, 2
      %s375 = scalar_select %p374, %s373, 2
      %s376 = smul.addr %s375, 6
      %s377 = smul.addr %s376, 4
      %s378 = scalar_lea.vmem %s7, %s377
      %p379 = scmp.lt.s32.totalorder %s19, 2
      %s380 = scalar_select %p379, %s19, 2
      %p381 = scmp.lt.s32.totalorder %s380, 2
      %s382 = scalar_select %p381, %s380, 2
      %s383 = smul.addr %s382, 256
      %s384 = smul.addr %s383, 4
      %s385 = scalar_lea.vmem %s1, %s384
      %p386 = scmp.lt.s32.totalorder %s19, 2
      %s387 = scalar_select %p386, %s19, 2
      %p388 = scmp.lt.s32.totalorder %s19, 2
      %s389 = scalar_select %p388, %s19, 2
      %p390 = scmp.lt.s32.totalorder %s389, 2
      %s391 = scalar_select %p390, %s389, 2
      %s392 = smul.addr %s391, 4
      %s393 = scalar_lea.vmem %s2, %s392
      %p394 = scmp.lt.s32.totalorder %s19, 2
      %s395 = scalar_select %p394, %s19, 2
      %p396 = scmp.lt.s32.totalorder %s19, 2
      %s397 = scalar_select %p396, %s19, 2
      %p398 = scmp.lt.s32.totalorder %s397, 2
      %s399 = scalar_select %p398, %s397, 2
      %s400 = smul.addr %s399, 4
      %s401 = smul.addr %s400, 4
      %s402 = scalar_lea.vmem %s3, %s401
      %p403 = scmp.lt.s32.totalorder %s19, 2
      %s404 = scalar_select %p403, %s19, 2
      %p405 = scmp.lt.s32.totalorder %s19, 2
      %s406 = scalar_select %p405, %s19, 2
      %p407 = scmp.lt.s32.totalorder %s406, 2
      %s408 = scalar_select %p407, %s406, 2
      %s409 = smul.addr %s408, 384
      %s410 = smul.addr %s409, 4
      %s411 = scalar_lea.vmem %s4, %s410
      %p412 = scmp.lt.s32.totalorder %s19, 2
      %s413 = scalar_select %p412, %s19, 2
      %p414 = scmp.lt.s32.totalorder %s19, 2
      %s415 = scalar_select %p414, %s19, 2
      %p416 = scmp.lt.s32.totalorder %s415, 2
      %s417 = scalar_select %p416, %s415, 2
      %s418 = smul.addr %s417, 6
      %s419 = scalar_lea.vmem %s5, %s418
      %p420 = scmp.lt.s32.totalorder %s19, 2
      %s421 = scalar_select %p420, %s19, 2
      %p422 = scmp.lt.s32.totalorder %s19, 2
      %s423 = scalar_select %p422, %s19, 2
      %p424 = scmp.lt.s32.totalorder %s423, 2
      %s425 = scalar_select %p424, %s423, 2
      %s426 = smul.addr %s425, 6
      %s427 = smul.addr %s426, 4
      %s428 = scalar_lea.vmem %s7, %s427
      %p429 = scmp.lt.s32.totalorder %s19, 2
      %s430 = scalar_select %p429, %s19, 2
      %p431 = scmp.eq.s32.totalorder %s19, 0
      // Predicated region
      $region45: #{forward.1} parent=43 // pred_check
        %p432 = pneg %p431
      $region46: #{forward.1} parent=43 // pred_check_branch
        %434 = sbr.rel (%p432) target = $region48
      $region47: #{forward.1} parent=43 // pred_region
        %v435 = vld [vmem:[%s0] sm:$0xff]
        %436 = vst [vmem:[%s6] sm:$0xff] %v435
      $region48: #{forward.1} parent=43 // pred_fallthru
        _
      %p437 = scmp.lt.s32.totalorder %s19, 3
      // Predicated region
      $region49: #{forward.1} parent=43 // pred_check
        %p438 = pneg %p437
      $region50: #{forward.1} parent=43 // pred_check_branch
        %440 = sbr.rel (%p438) target = $region52
      $region51: #{forward.1} parent=43 // pred_region
        %v441 = vld [vmem:[%s6] sm:$0xff]
        %v443 = vcombine.high %v441, %v441
        %v445 = vunpack.c.l.s4 1983009808
        %v446 = vunpack.c.0.s8 %v445
        %v447 = vlaneseq
        %v448 = vshrl.u32 %v447, 7
        %v449 = vsub.s32 %v446, %v448
        %v450 = vrot.slane %v441, %v449
        %v452 = vunpack.c.l.s4 1983009808
        %v453 = vunpack.c.0.s8 %v452
        %v454 = vlaneseq
        %v455 = vshrl.u32 %v454, 7
        %v456 = vsub.s32 %v453, %v455
        %v457 = vrot.slane %v443, %v456
        %v458 = vcombine.high %v450, %v450
        %v459 = vcombine.high %v457, %v457
        %v464 = vpack.c.bf16 %v450, %v450
        %v465 = vpack.c.bf16 %v458, %v458
        %v466 = vpack.c.bf16 %v457, %v457
        %v467 = vpack.c.bf16 %v459, %v459
        %v468 = vld [vmem:[%s385] sm:$0xff]
        %v469 = vld [vmem:[%s385 + $0x8] sm:$0xff]
        %v470 = vld [vmem:[%s385 + $0x10] sm:$0xff]
        %v471 = vld [vmem:[%s385 + $0x18] sm:$0xff]
        %v472 = vld [vmem:[%s385 + $0x20] sm:$0xff]
        %v473 = vld [vmem:[%s385 + $0x28] sm:$0xff]
        %v474 = vld [vmem:[%s385 + $0x30] sm:$0xff]
        %v475 = vld [vmem:[%s385 + $0x38] sm:$0xff]
        %v476 = vld [vmem:[%s385 + $0x40] sm:$0xff]
        %v477 = vld [vmem:[%s385 + $0x48] sm:$0xff]
        %v478 = vld [vmem:[%s385 + $0x50] sm:$0xff]
        %v479 = vld [vmem:[%s385 + $0x58] sm:$0xff]
        %v480 = vld [vmem:[%s385 + $0x60] sm:$0xff]
        %v481 = vld [vmem:[%s385 + $0x68] sm:$0xff]
        %v482 = vld [vmem:[%s385 + $0x70] sm:$0xff]
        %v483 = vld [vmem:[%s385 + $0x78] sm:$0xff]
        %v484 = vld [vmem:[%s385 + $0x80] sm:$0xff]
        %v485 = vld [vmem:[%s385 + $0x88] sm:$0xff]
        %v486 = vld [vmem:[%s385 + $0x90] sm:$0xff]
        %v487 = vld [vmem:[%s385 + $0x98] sm:$0xff]
        %v488 = vld [vmem:[%s385 + $0xa0] sm:$0xff]
        %v489 = vld [vmem:[%s385 + $0xa8] sm:$0xff]
        %v490 = vld [vmem:[%s385 + $0xb0] sm:$0xff]
        %v491 = vld [vmem:[%s385 + $0xb8] sm:$0xff]
        %v492 = vld [vmem:[%s385 + $0xc0] sm:$0xff]
        %v493 = vld [vmem:[%s385 + $0xc8] sm:$0xff]
        %v494 = vld [vmem:[%s385 + $0xd0] sm:$0xff]
        %v495 = vld [vmem:[%s385 + $0xd8] sm:$0xff]
        %v496 = vld [vmem:[%s385 + $0xe0] sm:$0xff]
        %v497 = vld [vmem:[%s385 + $0xe8] sm:$0xff]
        %v498 = vld [vmem:[%s385 + $0xf0] sm:$0xff]
        %v499 = vld [vmem:[%s385 + $0xf8] sm:$0xff]
        %v500 = vld [vmem:[%s385 + $0x100] sm:$0xff]
        %v501 = vld [vmem:[%s385 + $0x108] sm:$0xff]
        %v502 = vld [vmem:[%s385 + $0x110] sm:$0xff]
        %v503 = vld [vmem:[%s385 + $0x118] sm:$0xff]
        %v504 = vld [vmem:[%s385 + $0x120] sm:$0xff]
        %v505 = vld [vmem:[%s385 + $0x128] sm:$0xff]
        %v506 = vld [vmem:[%s385 + $0x130] sm:$0xff]
        %v507 = vld [vmem:[%s385 + $0x138] sm:$0xff]
        %v508 = vld [vmem:[%s385 + $0x140] sm:$0xff]
        %v509 = vld [vmem:[%s385 + $0x148] sm:$0xff]
        %v510 = vld [vmem:[%s385 + $0x150] sm:$0xff]
        %v511 = vld [vmem:[%s385 + $0x158] sm:$0xff]
        %v512 = vld [vmem:[%s385 + $0x160] sm:$0xff]
        %v513 = vld [vmem:[%s385 + $0x168] sm:$0xff]
        %v514 = vld [vmem:[%s385 + $0x170] sm:$0xff]
        %v515 = vld [vmem:[%s385 + $0x178] sm:$0xff]
        %v516 = vld [vmem:[%s385 + $0x180] sm:$0xff]
        %v517 = vld [vmem:[%s385 + $0x188] sm:$0xff]
        %v518 = vld [vmem:[%s385 + $0x190] sm:$0xff]
        %v519 = vld [vmem:[%s385 + $0x198] sm:$0xff]
        %v520 = vld [vmem:[%s385 + $0x1a0] sm:$0xff]
        %v521 = vld [vmem:[%s385 + $0x1a8] sm:$0xff]
        %v522 = vld [vmem:[%s385 + $0x1b0] sm:$0xff]
        %v523 = vld [vmem:[%s385 + $0x1b8] sm:$0xff]
        %v524 = vld [vmem:[%s385 + $0x1c0] sm:$0xff]
        %v525 = vld [vmem:[%s385 + $0x1c8] sm:$0xff]
        %v526 = vld [vmem:[%s385 + $0x1d0] sm:$0xff]
        %v527 = vld [vmem:[%s385 + $0x1d8] sm:$0xff]
        %v528 = vld [vmem:[%s385 + $0x1e0] sm:$0xff]
        %v529 = vld [vmem:[%s385 + $0x1e8] sm:$0xff]
        %v530 = vld [vmem:[%s385 + $0x1f0] sm:$0xff]
        %v531 = vld [vmem:[%s385 + $0x1f8] sm:$0xff]
        %v532 = vld [vmem:[%s385 + $0x200] sm:$0xff]
        %v533 = vld [vmem:[%s385 + $0x208] sm:$0xff]
        %v534 = vld [vmem:[%s385 + $0x210] sm:$0xff]
        %v535 = vld [vmem:[%s385 + $0x218] sm:$0xff]
        %v536 = vld [vmem:[%s385 + $0x220] sm:$0xff]
        %v537 = vld [vmem:[%s385 + $0x228] sm:$0xff]
        %v538 = vld [vmem:[%s385 + $0x230] sm:$0xff]
        %v539 = vld [vmem:[%s385 + $0x238] sm:$0xff]
        %v540 = vld [vmem:[%s385 + $0x240] sm:$0xff]
        %v541 = vld [vmem:[%s385 + $0x248] sm:$0xff]
        %v542 = vld [vmem:[%s385 + $0x250] sm:$0xff]
        %v543 = vld [vmem:[%s385 + $0x258] sm:$0xff]
        %v544 = vld [vmem:[%s385 + $0x260] sm:$0xff]
        %v545 = vld [vmem:[%s385 + $0x268] sm:$0xff]
        %v546 = vld [vmem:[%s385 + $0x270] sm:$0xff]
        %v547 = vld [vmem:[%s385 + $0x278] sm:$0xff]
        %v548 = vld [vmem:[%s385 + $0x280] sm:$0xff]
        %v549 = vld [vmem:[%s385 + $0x288] sm:$0xff]
        %v550 = vld [vmem:[%s385 + $0x290] sm:$0xff]
        %v551 = vld [vmem:[%s385 + $0x298] sm:$0xff]
        %v552 = vld [vmem:[%s385 + $0x2a0] sm:$0xff]
        %v553 = vld [vmem:[%s385 + $0x2a8] sm:$0xff]
        %v554 = vld [vmem:[%s385 + $0x2b0] sm:$0xff]
        %v555 = vld [vmem:[%s385 + $0x2b8] sm:$0xff]
        %v556 = vld [vmem:[%s385 + $0x2c0] sm:$0xff]
        %v557 = vld [vmem:[%s385 + $0x2c8] sm:$0xff]
        %v558 = vld [vmem:[%s385 + $0x2d0] sm:$0xff]
        %v559 = vld [vmem:[%s385 + $0x2d8] sm:$0xff]
        %v560 = vld [vmem:[%s385 + $0x2e0] sm:$0xff]
        %v561 = vld [vmem:[%s385 + $0x2e8] sm:$0xff]
        %v562 = vld [vmem:[%s385 + $0x2f0] sm:$0xff]
        %v563 = vld [vmem:[%s385 + $0x2f8] sm:$0xff]
        %v564 = vld [vmem:[%s385 + $0x300] sm:$0xff]
        %v565 = vld [vmem:[%s385 + $0x308] sm:$0xff]
        %v566 = vld [vmem:[%s385 + $0x310] sm:$0xff]
        %v567 = vld [vmem:[%s385 + $0x318] sm:$0xff]
        %v568 = vld [vmem:[%s385 + $0x320] sm:$0xff]
        %v569 = vld [vmem:[%s385 + $0x328] sm:$0xff]
        %v570 = vld [vmem:[%s385 + $0x330] sm:$0xff]
        %v571 = vld [vmem:[%s385 + $0x338] sm:$0xff]
        %v572 = vld [vmem:[%s385 + $0x340] sm:$0xff]
        %v573 = vld [vmem:[%s385 + $0x348] sm:$0xff]
        %v574 = vld [vmem:[%s385 + $0x350] sm:$0xff]
        %v575 = vld [vmem:[%s385 + $0x358] sm:$0xff]
        %v576 = vld [vmem:[%s385 + $0x360] sm:$0xff]
        %v577 = vld [vmem:[%s385 + $0x368] sm:$0xff]
        %v578 = vld [vmem:[%s385 + $0x370] sm:$0xff]
        %v579 = vld [vmem:[%s385 + $0x378] sm:$0xff]
        %v580 = vld [vmem:[%s385 + $0x380] sm:$0xff]
        %v581 = vld [vmem:[%s385 + $0x388] sm:$0xff]
        %v582 = vld [vmem:[%s385 + $0x390] sm:$0xff]
        %v583 = vld [vmem:[%s385 + $0x398] sm:$0xff]
        %v584 = vld [vmem:[%s385 + $0x3a0] sm:$0xff]
        %v585 = vld [vmem:[%s385 + $0x3a8] sm:$0xff]
        %v586 = vld [vmem:[%s385 + $0x3b0] sm:$0xff]
        %v587 = vld [vmem:[%s385 + $0x3b8] sm:$0xff]
        %v588 = vld [vmem:[%s385 + $0x3c0] sm:$0xff]
        %v589 = vld [vmem:[%s385 + $0x3c8] sm:$0xff]
        %v590 = vld [vmem:[%s385 + $0x3d0] sm:$0xff]
        %v591 = vld [vmem:[%s385 + $0x3d8] sm:$0xff]
        %v592 = vld [vmem:[%s385 + $0x3e0] sm:$0xff]
        %v593 = vld [vmem:[%s385 + $0x3e8] sm:$0xff]
        %v594 = vld [vmem:[%s385 + $0x3f0] sm:$0xff]
        %v595 = vld [vmem:[%s385 + $0x3f8] sm:$0xff]
        %v596 = vld [vmem:[%s393] sm:$0xf]
        %v598 = vlaneseq
        %v599 = vshrl.u32 %v598, 7
        %v600 = vsub.s32 0, %v599
        %v601 = vrot.slane %v596, %v600
        %v602 = vlaneseq
        %v603 = vshrl.u32 %v602, 7
        %v604 = vsub.s32 1, %v603
        %v605 = vrot.slane %v596, %v604
        %v606 = vlaneseq
        %v607 = vshrl.u32 %v606, 7
        %v608 = vsub.s32 2, %v607
        %v609 = vrot.slane %v596, %v608
        %v610 = vlaneseq
        %v611 = vshrl.u32 %v610, 7
        %v612 = vsub.s32 3, %v611
        %v613 = vrot.slane %v596, %v612
        %v746 = vunpack.c.l.b16 %v468
        %v747 = vunpack.c.h.b16 %v468
        %v748 = vunpack.c.l.b16 %v469
        %v749 = vunpack.c.h.b16 %v469
        %v750 = vunpack.c.l.b16 %v470
        %v751 = vunpack.c.h.b16 %v470
        %v752 = vunpack.c.l.b16 %v471
        %v753 = vunpack.c.h.b16 %v471
        %v754 = vunpack.c.l.b16 %v472
        %v755 = vunpack.c.h.b16 %v472
        %v756 = vunpack.c.l.b16 %v473
        %v757 = vunpack.c.h.b16 %v473
        %v758 = vunpack.c.l.b16 %v474
        %v759 = vunpack.c.h.b16 %v474
        %v760 = vunpack.c.l.b16 %v475
        %v761 = vunpack.c.h.b16 %v475
        %v762 = vunpack.c.l.b16 %v476
        %v763 = vunpack.c.h.b16 %v476
        %v764 = vunpack.c.l.b16 %v477
        %v765 = vunpack.c.h.b16 %v477
        %v766 = vunpack.c.l.b16 %v478
        %v767 = vunpack.c.h.b16 %v478
        %v768 = vunpack.c.l.b16 %v479
        %v769 = vunpack.c.h.b16 %v479
        %v770 = vunpack.c.l.b16 %v480
        %v771 = vunpack.c.h.b16 %v480
        %v772 = vunpack.c.l.b16 %v481
        %v773 = vunpack.c.h.b16 %v481
        %v774 = vunpack.c.l.b16 %v482
        %v775 = vunpack.c.h.b16 %v482
        %v776 = vunpack.c.l.b16 %v483
        %v777 = vunpack.c.h.b16 %v483
        %v778 = vunpack.c.l.b16 %v484
        %v779 = vunpack.c.h.b16 %v484
        %v780 = vunpack.c.l.b16 %v485
        %v781 = vunpack.c.h.b16 %v485
        %v782 = vunpack.c.l.b16 %v486
        %v783 = vunpack.c.h.b16 %v486
        %v784 = vunpack.c.l.b16 %v487
        %v785 = vunpack.c.h.b16 %v487
        %v786 = vunpack.c.l.b16 %v488
        %v787 = vunpack.c.h.b16 %v488
        %v788 = vunpack.c.l.b16 %v489
        %v789 = vunpack.c.h.b16 %v489
        %v790 = vunpack.c.l.b16 %v490
        %v791 = vunpack.c.h.b16 %v490
        %v792 = vunpack.c.l.b16 %v491
        %v793 = vunpack.c.h.b16 %v491
        %v794 = vunpack.c.l.b16 %v492
        %v795 = vunpack.c.h.b16 %v492
        %v796 = vunpack.c.l.b16 %v493
        %v797 = vunpack.c.h.b16 %v493
        %v798 = vunpack.c.l.b16 %v494
        %v799 = vunpack.c.h.b16 %v494
        %v800 = vunpack.c.l.b16 %v495
        %v801 = vunpack.c.h.b16 %v495
        %v802 = vunpack.c.l.b16 %v496
        %v803 = vunpack.c.h.b16 %v496
        %v804 = vunpack.c.l.b16 %v497
        %v805 = vunpack.c.h.b16 %v497
        %v806 = vunpack.c.l.b16 %v498
        %v807 = vunpack.c.h.b16 %v498
        %v808 = vunpack.c.l.b16 %v499
        %v809 = vunpack.c.h.b16 %v499
        %v810 = vunpack.c.l.b16 %v500
        %v811 = vunpack.c.h.b16 %v500
        %v812 = vunpack.c.l.b16 %v501
        %v813 = vunpack.c.h.b16 %v501
        %v814 = vunpack.c.l.b16 %v502
        %v815 = vunpack.c.h.b16 %v502
        %v816 = vunpack.c.l.b16 %v503
        %v817 = vunpack.c.h.b16 %v503
        %v818 = vunpack.c.l.b16 %v504
        %v819 = vunpack.c.h.b16 %v504
        %v820 = vunpack.c.l.b16 %v505
        %v821 = vunpack.c.h.b16 %v505
        %v822 = vunpack.c.l.b16 %v506
        %v823 = vunpack.c.h.b16 %v506
        %v824 = vunpack.c.l.b16 %v507
        %v825 = vunpack.c.h.b16 %v507
        %v826 = vunpack.c.l.b16 %v508
        %v827 = vunpack.c.h.b16 %v508
        %v828 = vunpack.c.l.b16 %v509
        %v829 = vunpack.c.h.b16 %v509
        %v830 = vunpack.c.l.b16 %v510
        %v831 = vunpack.c.h.b16 %v510
        %v832 = vunpack.c.l.b16 %v511
        %v833 = vunpack.c.h.b16 %v511
        %v834 = vunpack.c.l.b16 %v512
        %v835 = vunpack.c.h.b16 %v512
        %v836 = vunpack.c.l.b16 %v513
        %v837 = vunpack.c.h.b16 %v513
        %v838 = vunpack.c.l.b16 %v514
        %v839 = vunpack.c.h.b16 %v514
        %v840 = vunpack.c.l.b16 %v515
        %v841 = vunpack.c.h.b16 %v515
        %v842 = vunpack.c.l.b16 %v516
        %v843 = vunpack.c.h.b16 %v516
        %v844 = vunpack.c.l.b16 %v517
        %v845 = vunpack.c.h.b16 %v517
        %v846 = vunpack.c.l.b16 %v518
        %v847 = vunpack.c.h.b16 %v518
        %v848 = vunpack.c.l.b16 %v519
        %v849 = vunpack.c.h.b16 %v519
        %v850 = vunpack.c.l.b16 %v520
        %v851 = vunpack.c.h.b16 %v520
        %v852 = vunpack.c.l.b16 %v521
        %v853 = vunpack.c.h.b16 %v521
        %v854 = vunpack.c.l.b16 %v522
        %v855 = vunpack.c.h.b16 %v522
        %v856 = vunpack.c.l.b16 %v523
        %v857 = vunpack.c.h.b16 %v523
        %v858 = vunpack.c.l.b16 %v524
        %v859 = vunpack.c.h.b16 %v524
        %v860 = vunpack.c.l.b16 %v525
        %v861 = vunpack.c.h.b16 %v525
        %v862 = vunpack.c.l.b16 %v526
        %v863 = vunpack.c.h.b16 %v526
        %v864 = vunpack.c.l.b16 %v527
        %v865 = vunpack.c.h.b16 %v527
        %v866 = vunpack.c.l.b16 %v528
        %v867 = vunpack.c.h.b16 %v528
        %v868 = vunpack.c.l.b16 %v529
        %v869 = vunpack.c.h.b16 %v529
        %v870 = vunpack.c.l.b16 %v530
        %v871 = vunpack.c.h.b16 %v530
        %v872 = vunpack.c.l.b16 %v531
        %v873 = vunpack.c.h.b16 %v531
        %v874 = vunpack.c.l.b16 %v532
        %v875 = vunpack.c.h.b16 %v532
        %v876 = vunpack.c.l.b16 %v533
        %v877 = vunpack.c.h.b16 %v533
        %v878 = vunpack.c.l.b16 %v534
        %v879 = vunpack.c.h.b16 %v534
        %v880 = vunpack.c.l.b16 %v535
        %v881 = vunpack.c.h.b16 %v535
        %v882 = vunpack.c.l.b16 %v536
        %v883 = vunpack.c.h.b16 %v536
        %v884 = vunpack.c.l.b16 %v537
        %v885 = vunpack.c.h.b16 %v537
        %v886 = vunpack.c.l.b16 %v538
        %v887 = vunpack.c.h.b16 %v538
        %v888 = vunpack.c.l.b16 %v539
        %v889 = vunpack.c.h.b16 %v539
        %v890 = vunpack.c.l.b16 %v540
        %v891 = vunpack.c.h.b16 %v540
        %v892 = vunpack.c.l.b16 %v541
        %v893 = vunpack.c.h.b16 %v541
        %v894 = vunpack.c.l.b16 %v542
        %v895 = vunpack.c.h.b16 %v542
        %v896 = vunpack.c.l.b16 %v543
        %v897 = vunpack.c.h.b16 %v543
        %v898 = vunpack.c.l.b16 %v544
        %v899 = vunpack.c.h.b16 %v544
        %v900 = vunpack.c.l.b16 %v545
        %v901 = vunpack.c.h.b16 %v545
        %v902 = vunpack.c.l.b16 %v546
        %v903 = vunpack.c.h.b16 %v546
        %v904 = vunpack.c.l.b16 %v547
        %v905 = vunpack.c.h.b16 %v547
        %v906 = vunpack.c.l.b16 %v548
        %v907 = vunpack.c.h.b16 %v548
        %v908 = vunpack.c.l.b16 %v549
        %v909 = vunpack.c.h.b16 %v549
        %v910 = vunpack.c.l.b16 %v550
        %v911 = vunpack.c.h.b16 %v550
        %v912 = vunpack.c.l.b16 %v551
        %v913 = vunpack.c.h.b16 %v551
        %v914 = vunpack.c.l.b16 %v552
        %v915 = vunpack.c.h.b16 %v552
        %v916 = vunpack.c.l.b16 %v553
        %v917 = vunpack.c.h.b16 %v553
        %v918 = vunpack.c.l.b16 %v554
        %v919 = vunpack.c.h.b16 %v554
        %v920 = vunpack.c.l.b16 %v555
        %v921 = vunpack.c.h.b16 %v555
        %v922 = vunpack.c.l.b16 %v556
        %v923 = vunpack.c.h.b16 %v556
        %v924 = vunpack.c.l.b16 %v557
        %v925 = vunpack.c.h.b16 %v557
        %v926 = vunpack.c.l.b16 %v558
        %v927 = vunpack.c.h.b16 %v558
        %v928 = vunpack.c.l.b16 %v559
        %v929 = vunpack.c.h.b16 %v559
        %v930 = vunpack.c.l.b16 %v560
        %v931 = vunpack.c.h.b16 %v560
        %v932 = vunpack.c.l.b16 %v561
        %v933 = vunpack.c.h.b16 %v561
        %v934 = vunpack.c.l.b16 %v562
        %v935 = vunpack.c.h.b16 %v562
        %v936 = vunpack.c.l.b16 %v563
        %v937 = vunpack.c.h.b16 %v563
        %v938 = vunpack.c.l.b16 %v564
        %v939 = vunpack.c.h.b16 %v564
        %v940 = vunpack.c.l.b16 %v565
        %v941 = vunpack.c.h.b16 %v565
        %v942 = vunpack.c.l.b16 %v566
        %v943 = vunpack.c.h.b16 %v566
        %v944 = vunpack.c.l.b16 %v567
        %v945 = vunpack.c.h.b16 %v567
        %v946 = vunpack.c.l.b16 %v568
        %v947 = vunpack.c.h.b16 %v568
        %v948 = vunpack.c.l.b16 %v569
        %v949 = vunpack.c.h.b16 %v569
        %v950 = vunpack.c.l.b16 %v570
        %v951 = vunpack.c.h.b16 %v570
        %v952 = vunpack.c.l.b16 %v571
        %v953 = vunpack.c.h.b16 %v571
        %v954 = vunpack.c.l.b16 %v572
        %v955 = vunpack.c.h.b16 %v572
        %v956 = vunpack.c.l.b16 %v573
        %v957 = vunpack.c.h.b16 %v573
        %v958 = vunpack.c.l.b16 %v574
        %v959 = vunpack.c.h.b16 %v574
        %v960 = vunpack.c.l.b16 %v575
        %v961 = vunpack.c.h.b16 %v575
        %v962 = vunpack.c.l.b16 %v576
        %v963 = vunpack.c.h.b16 %v576
        %v964 = vunpack.c.l.b16 %v577
        %v965 = vunpack.c.h.b16 %v577
        %v966 = vunpack.c.l.b16 %v578
        %v967 = vunpack.c.h.b16 %v578
        %v968 = vunpack.c.l.b16 %v579
        %v969 = vunpack.c.h.b16 %v579
        %v970 = vunpack.c.l.b16 %v580
        %v971 = vunpack.c.h.b16 %v580
        %v972 = vunpack.c.l.b16 %v581
        %v973 = vunpack.c.h.b16 %v581
        %v974 = vunpack.c.l.b16 %v582
        %v975 = vunpack.c.h.b16 %v582
        %v976 = vunpack.c.l.b16 %v583
        %v977 = vunpack.c.h.b16 %v583
        %v978 = vunpack.c.l.b16 %v584
        %v979 = vunpack.c.h.b16 %v584
        %v980 = vunpack.c.l.b16 %v585
        %v981 = vunpack.c.h.b16 %v585
        %v982 = vunpack.c.l.b16 %v586
        %v983 = vunpack.c.h.b16 %v586
        %v984 = vunpack.c.l.b16 %v587
        %v985 = vunpack.c.h.b16 %v587
        %v986 = vunpack.c.l.b16 %v588
        %v987 = vunpack.c.h.b16 %v588
        %v988 = vunpack.c.l.b16 %v589
        %v989 = vunpack.c.h.b16 %v589
        %v990 = vunpack.c.l.b16 %v590
        %v991 = vunpack.c.h.b16 %v590
        %v992 = vunpack.c.l.b16 %v591
        %v993 = vunpack.c.h.b16 %v591
        %v994 = vunpack.c.l.b16 %v592
        %v995 = vunpack.c.h.b16 %v592
        %v996 = vunpack.c.l.b16 %v593
        %v997 = vunpack.c.h.b16 %v593
        %v998 = vunpack.c.l.b16 %v594
        %v999 = vunpack.c.h.b16 %v594
        %v1000 = vunpack.c.l.b16 %v595
        %v1001 = vunpack.c.h.b16 %v595
        %v1002 = vpack.c.b16 %v750, %v746
        %v1003 = vpack.c.b16 %v751, %v747
        %v1004 = vpack.c.b16 %v752, %v748
        %v1005 = vpack.c.b16 %v753, %v749
        %v1006 = vpack.c.b16 %v758, %v754
        %v1007 = vpack.c.b16 %v759, %v755
        %v1008 = vpack.c.b16 %v760, %v756
        %v1009 = vpack.c.b16 %v761, %v757
        %v1010 = vpack.c.b16 %v766, %v762
        %v1011 = vpack.c.b16 %v767, %v763
        %v1012 = vpack.c.b16 %v768, %v764
        %v1013 = vpack.c.b16 %v769, %v765
        %v1014 = vpack.c.b16 %v774, %v770
        %v1015 = vpack.c.b16 %v775, %v771
        %v1016 = vpack.c.b16 %v776, %v772
        %v1017 = vpack.c.b16 %v777, %v773
        %v1018 = vpack.c.b16 %v782, %v778
        %v1019 = vpack.c.b16 %v783, %v779
        %v1020 = vpack.c.b16 %v784, %v780
        %v1021 = vpack.c.b16 %v785, %v781
        %v1022 = vpack.c.b16 %v790, %v786
        %v1023 = vpack.c.b16 %v791, %v787
        %v1024 = vpack.c.b16 %v792, %v788
        %v1025 = vpack.c.b16 %v793, %v789
        %v1026 = vpack.c.b16 %v798, %v794
        %v1027 = vpack.c.b16 %v799, %v795
        %v1028 = vpack.c.b16 %v800, %v796
        %v1029 = vpack.c.b16 %v801, %v797
        %v1030 = vpack.c.b16 %v806, %v802
        %v1031 = vpack.c.b16 %v807, %v803
        %v1032 = vpack.c.b16 %v808, %v804
        %v1033 = vpack.c.b16 %v809, %v805
        %v1034 = vpack.c.b16 %v814, %v810
        %v1035 = vpack.c.b16 %v815, %v811
        %v1036 = vpack.c.b16 %v816, %v812
        %v1037 = vpack.c.b16 %v817, %v813
        %v1038 = vpack.c.b16 %v822, %v818
        %v1039 = vpack.c.b16 %v823, %v819
        %v1040 = vpack.c.b16 %v824, %v820
        %v1041 = vpack.c.b16 %v825, %v821
        %v1042 = vpack.c.b16 %v830, %v826
        %v1043 = vpack.c.b16 %v831, %v827
        %v1044 = vpack.c.b16 %v832, %v828
        %v1045 = vpack.c.b16 %v833, %v829
        %v1046 = vpack.c.b16 %v838, %v834
        %v1047 = vpack.c.b16 %v839, %v835
        %v1048 = vpack.c.b16 %v840, %v836
        %v1049 = vpack.c.b16 %v841, %v837
        %v1050 = vpack.c.b16 %v846, %v842
        %v1051 = vpack.c.b16 %v847, %v843
        %v1052 = vpack.c.b16 %v848, %v844
        %v1053 = vpack.c.b16 %v849, %v845
        %v1054 = vpack.c.b16 %v854, %v850
        %v1055 = vpack.c.b16 %v855, %v851
        %v1056 = vpack.c.b16 %v856, %v852
        %v1057 = vpack.c.b16 %v857, %v853
        %v1058 = vpack.c.b16 %v862, %v858
        %v1059 = vpack.c.b16 %v863, %v859
        %v1060 = vpack.c.b16 %v864, %v860
        %v1061 = vpack.c.b16 %v865, %v861
        %v1062 = vpack.c.b16 %v870, %v866
        %v1063 = vpack.c.b16 %v871, %v867
        %v1064 = vpack.c.b16 %v872, %v868
        %v1065 = vpack.c.b16 %v873, %v869
        %v1066 = vpack.c.b16 %v878, %v874
        %v1067 = vpack.c.b16 %v879, %v875
        %v1068 = vpack.c.b16 %v880, %v876
        %v1069 = vpack.c.b16 %v881, %v877
        %v1070 = vpack.c.b16 %v886, %v882
        %v1071 = vpack.c.b16 %v887, %v883
        %v1072 = vpack.c.b16 %v888, %v884
        %v1073 = vpack.c.b16 %v889, %v885
        %v1074 = vpack.c.b16 %v894, %v890
        %v1075 = vpack.c.b16 %v895, %v891
        %v1076 = vpack.c.b16 %v896, %v892
        %v1077 = vpack.c.b16 %v897, %v893
        %v1078 = vpack.c.b16 %v902, %v898
        %v1079 = vpack.c.b16 %v903, %v899
        %v1080 = vpack.c.b16 %v904, %v900
        %v1081 = vpack.c.b16 %v905, %v901
        %v1082 = vpack.c.b16 %v910, %v906
        %v1083 = vpack.c.b16 %v911, %v907
        %v1084 = vpack.c.b16 %v912, %v908
        %v1085 = vpack.c.b16 %v913, %v909
        %v1086 = vpack.c.b16 %v918, %v914
        %v1087 = vpack.c.b16 %v919, %v915
        %v1088 = vpack.c.b16 %v920, %v916
        %v1089 = vpack.c.b16 %v921, %v917
        %v1090 = vpack.c.b16 %v926, %v922
        %v1091 = vpack.c.b16 %v927, %v923
        %v1092 = vpack.c.b16 %v928, %v924
        %v1093 = vpack.c.b16 %v929, %v925
        %v1094 = vpack.c.b16 %v934, %v930
        %v1095 = vpack.c.b16 %v935, %v931
        %v1096 = vpack.c.b16 %v936, %v932
        %v1097 = vpack.c.b16 %v937, %v933
        %v1098 = vpack.c.b16 %v942, %v938
        %v1099 = vpack.c.b16 %v943, %v939
        %v1100 = vpack.c.b16 %v944, %v940
        %v1101 = vpack.c.b16 %v945, %v941
        %v1102 = vpack.c.b16 %v950, %v946
        %v1103 = vpack.c.b16 %v951, %v947
        %v1104 = vpack.c.b16 %v952, %v948
        %v1105 = vpack.c.b16 %v953, %v949
        %v1106 = vpack.c.b16 %v958, %v954
        %v1107 = vpack.c.b16 %v959, %v955
        %v1108 = vpack.c.b16 %v960, %v956
        %v1109 = vpack.c.b16 %v961, %v957
        %v1110 = vpack.c.b16 %v966, %v962
        %v1111 = vpack.c.b16 %v967, %v963
        %v1112 = vpack.c.b16 %v968, %v964
        %v1113 = vpack.c.b16 %v969, %v965
        %v1114 = vpack.c.b16 %v974, %v970
        %v1115 = vpack.c.b16 %v975, %v971
        %v1116 = vpack.c.b16 %v976, %v972
        %v1117 = vpack.c.b16 %v977, %v973
        %v1118 = vpack.c.b16 %v982, %v978
        %v1119 = vpack.c.b16 %v983, %v979
        %v1120 = vpack.c.b16 %v984, %v980
        %v1121 = vpack.c.b16 %v985, %v981
        %v1122 = vpack.c.b16 %v990, %v986
        %v1123 = vpack.c.b16 %v991, %v987
        %v1124 = vpack.c.b16 %v992, %v988
        %v1125 = vpack.c.b16 %v993, %v989
        %v1126 = vpack.c.b16 %v998, %v994
        %v1127 = vpack.c.b16 %v999, %v995
        %v1128 = vpack.c.b16 %v1000, %v996
        %v1129 = vpack.c.b16 %v1001, %v997
        %1258 = vmatprep.subr.bf16.mxu0 %v1031
        %1259 = vmatpush1.bf16.msra.mxu0 %v1030
        %1260 = vmatprep.subr.bf16.mxu0 %v1027
        %1261 = vmatpush1.bf16.msra.mxu0 %v1026
        %1262 = vmatprep.subr.bf16.mxu0 %v1023
        %1263 = vmatpush1.bf16.msra.mxu0 %v1022
        %1264 = vmatprep.subr.bf16.mxu0 %v1019
        %1265 = vmatpush1.bf16.msra.mxu0 %v1018
        %1266 = vmatprep.subr.bf16.mxu0 %v1015
        %1267 = vmatpush1.bf16.msra.mxu0 %v1014
        %1268 = vmatprep.subr.bf16.mxu0 %v1011
        %1269 = vmatpush1.bf16.msra.mxu0 %v1010
        %1270 = vmatprep.subr.bf16.mxu0 %v1007
        %1271 = vmatpush1.bf16.msra.mxu0 %v1006
        %1272 = vmatprep.subr.bf16.mxu0 %v1003
        %1273 = vmatpush1.bf16.msra.mxu0 %v1002
        %1274 = vmatprep.subr.bf16.mxu0 %v1063
        %1275 = vmatpush2.bf16.msra.mxu0 %v1062
        %1276 = vmatprep.subr.bf16.mxu0 %v1059
        %1277 = vmatpush2.bf16.msra.mxu0 %v1058
        %1278 = vmatprep.subr.bf16.mxu0 %v1055
        %1279 = vmatpush2.bf16.msra.mxu0 %v1054
        %1280 = vmatprep.subr.bf16.mxu0 %v1051
        %1281 = vmatpush2.bf16.msra.mxu0 %v1050
        %1282 = vmatprep.subr.bf16.mxu0 %v1047
        %1283 = vmatpush2.bf16.msra.mxu0 %v1046
        %1284 = vmatprep.subr.bf16.mxu0 %v1043
        %1285 = vmatpush2.bf16.msra.mxu0 %v1042
        %1286 = vmatprep.subr.bf16.mxu0 %v1039
        %1287 = vmatpush2.bf16.msra.mxu0 %v1038
        %1288 = vmatprep.subr.bf16.mxu0 %v1035
        %1289 = vmatpush2.bf16.msra.mxu0 %v1034
        %1290 = vmatprep.mubr.bf16.mxu0 %v465
        %1291 = vmatmul.mubr.bf16.gmra.mxu0 %v464
        %v1292 = vpop.f32.mrf.mxu0
        %v1293 = vadd.f32 %v601, %v1292
        %v1294 = vpop.f32.mrf.mxu0
        %v1295 = vadd.f32 %v605, %v1294
        %v1296 = vpop.f32.mrf.mxu0
        %v1297 = vpop.f32.mrf.mxu0
        %1298 = vdwg.mxu0
        %1299 = vmatprep.subr.bf16.mxu0 %v1095
        %1300 = vmatpush1.bf16.msra.mxu0 %v1094
        %1301 = vmatprep.subr.bf16.mxu0 %v1091
        %1302 = vmatpush1.bf16.msra.mxu0 %v1090
        %1303 = vmatprep.subr.bf16.mxu0 %v1087
        %1304 = vmatpush1.bf16.msra.mxu0 %v1086
        %1305 = vmatprep.subr.bf16.mxu0 %v1083
        %1306 = vmatpush1.bf16.msra.mxu0 %v1082
        %1307 = vmatprep.subr.bf16.mxu0 %v1079
        %1308 = vmatpush1.bf16.msra.mxu0 %v1078
        %1309 = vmatprep.subr.bf16.mxu0 %v1075
        %1310 = vmatpush1.bf16.msra.mxu0 %v1074
        %1311 = vmatprep.subr.bf16.mxu0 %v1071
        %1312 = vmatpush1.bf16.msra.mxu0 %v1070
        %1313 = vmatprep.subr.bf16.mxu0 %v1067
        %1314 = vmatpush1.bf16.msra.mxu0 %v1066
        %1315 = vmatprep.subr.bf16.mxu0 %v1127
        %1316 = vmatpush2.bf16.msra.mxu0 %v1126
        %1317 = vmatprep.subr.bf16.mxu0 %v1123
        %1318 = vmatpush2.bf16.msra.mxu0 %v1122
        %1319 = vmatprep.subr.bf16.mxu0 %v1119
        %1320 = vmatpush2.bf16.msra.mxu0 %v1118
        %1321 = vmatprep.subr.bf16.mxu0 %v1115
        %1322 = vmatpush2.bf16.msra.mxu0 %v1114
        %1323 = vmatprep.subr.bf16.mxu0 %v1111
        %1324 = vmatpush2.bf16.msra.mxu0 %v1110
        %1325 = vmatprep.subr.bf16.mxu0 %v1107
        %1326 = vmatpush2.bf16.msra.mxu0 %v1106
        %1327 = vmatprep.subr.bf16.mxu0 %v1103
        %1328 = vmatpush2.bf16.msra.mxu0 %v1102
        %1329 = vmatprep.subr.bf16.mxu0 %v1099
        %1330 = vmatpush2.bf16.msra.mxu0 %v1098
        %1331 = vmatprep.mubr.bf16.mxu0 %v467
        %1332 = vmatmul.mubr.bf16.gmra.mxu0 %v466
        %v1333 = vpop.f32.mrf.mxu0
        %v1334 = vadd.f32 %v1293, %v1333
        %v1335 = vpop.f32.mrf.mxu0
        %v1336 = vadd.f32 %v1295, %v1335
        %v1337 = vpop.f32.mrf.mxu0
        %v1338 = vpop.f32.mrf.mxu0
        %1339 = vdwg.mxu0
        %1340 = vmatprep.subr.bf16.mxu0 %v1033
        %1341 = vmatpush1.bf16.msra.mxu0 %v1032
        %1342 = vmatprep.subr.bf16.mxu0 %v1029
        %1343 = vmatpush1.bf16.msra.mxu0 %v1028
        %1344 = vmatprep.subr.bf16.mxu0 %v1025
        %1345 = vmatpush1.bf16.msra.mxu0 %v1024
        %1346 = vmatprep.subr.bf16.mxu0 %v1021
        %1347 = vmatpush1.bf16.msra.mxu0 %v1020
        %1348 = vmatprep.subr.bf16.mxu0 %v1017
        %1349 = vmatpush1.bf16.msra.mxu0 %v1016
        %1350 = vmatprep.subr.bf16.mxu0 %v1013
        %1351 = vmatpush1.bf16.msra.mxu0 %v1012
        %1352 = vmatprep.subr.bf16.mxu0 %v1009
        %1353 = vmatpush1.bf16.msra.mxu0 %v1008
        %1354 = vmatprep.subr.bf16.mxu0 %v1005
        %1355 = vmatpush1.bf16.msra.mxu0 %v1004
        %1356 = vmatprep.subr.bf16.mxu0 %v1065
        %1357 = vmatpush2.bf16.msra.mxu0 %v1064
        %1358 = vmatprep.subr.bf16.mxu0 %v1061
        %1359 = vmatpush2.bf16.msra.mxu0 %v1060
        %1360 = vmatprep.subr.bf16.mxu0 %v1057
        %1361 = vmatpush2.bf16.msra.mxu0 %v1056
        %1362 = vmatprep.subr.bf16.mxu0 %v1053
        %1363 = vmatpush2.bf16.msra.mxu0 %v1052
        %1364 = vmatprep.subr.bf16.mxu0 %v1049
        %1365 = vmatpush2.bf16.msra.mxu0 %v1048
        %1366 = vmatprep.subr.bf16.mxu0 %v1045
        %1367 = vmatpush2.bf16.msra.mxu0 %v1044
        %1368 = vmatprep.subr.bf16.mxu0 %v1041
        %1369 = vmatpush2.bf16.msra.mxu0 %v1040
        %1370 = vmatprep.subr.bf16.mxu0 %v1037
        %1371 = vmatpush2.bf16.msra.mxu0 %v1036
        %1372 = vmatprep.mubr.bf16.mxu0 %v465
        %1373 = vmatmul.mubr.bf16.gmra.mxu0 %v464
        %v1374 = vpop.f32.mrf.mxu0
        %v1375 = vadd.f32 %v609, %v1374
        %v1376 = vpop.f32.mrf.mxu0
        %v1377 = vadd.f32 %v613, %v1376
        %v1378 = vpop.f32.mrf.mxu0
        %v1379 = vpop.f32.mrf.mxu0
        %1380 = vdwg.mxu0
        %1381 = vmatprep.subr.bf16.mxu0 %v1097
        %1382 = vmatpush1.bf16.msra.mxu0 %v1096
        %1383 = vmatprep.subr.bf16.mxu0 %v1093
        %1384 = vmatpush1.bf16.msra.mxu0 %v1092
        %1385 = vmatprep.subr.bf16.mxu0 %v1089
        %1386 = vmatpush1.bf16.msra.mxu0 %v1088
        %1387 = vmatprep.subr.bf16.mxu0 %v1085
        %1388 = vmatpush1.bf16.msra.mxu0 %v1084
        %1389 = vmatprep.subr.bf16.mxu0 %v1081
        %1390 = vmatpush1.bf16.msra.mxu0 %v1080
        %1391 = vmatprep.subr.bf16.mxu0 %v1077
        %1392 = vmatpush1.bf16.msra.mxu0 %v1076
        %1393 = vmatprep.subr.bf16.mxu0 %v1073
        %1394 = vmatpush1.bf16.msra.mxu0 %v1072
        %1395 = vmatprep.subr.bf16.mxu0 %v1069
        %1396 = vmatpush1.bf16.msra.mxu0 %v1068
        %1397 = vmatprep.subr.bf16.mxu0 %v1129
        %1398 = vmatpush2.bf16.msra.mxu0 %v1128
        %1399 = vmatprep.subr.bf16.mxu0 %v1125
        %1400 = vmatpush2.bf16.msra.mxu0 %v1124
        %1401 = vmatprep.subr.bf16.mxu0 %v1121
        %1402 = vmatpush2.bf16.msra.mxu0 %v1120
        %1403 = vmatprep.subr.bf16.mxu0 %v1117
        %1404 = vmatpush2.bf16.msra.mxu0 %v1116
        %1405 = vmatprep.subr.bf16.mxu0 %v1113
        %1406 = vmatpush2.bf16.msra.mxu0 %v1112
        %1407 = vmatprep.subr.bf16.mxu0 %v1109
        %1408 = vmatpush2.bf16.msra.mxu0 %v1108
        %1409 = vmatprep.subr.bf16.mxu0 %v1105
        %1410 = vmatpush2.bf16.msra.mxu0 %v1104
        %1411 = vmatprep.subr.bf16.mxu0 %v1101
        %1412 = vmatpush2.bf16.msra.mxu0 %v1100
        %1413 = vmatprep.mubr.bf16.mxu0 %v467
        %1414 = vmatmul.mubr.bf16.gmra.mxu0 %v466
        %v1415 = vpop.f32.mrf.mxu0
        %v1416 = vadd.f32 %v1375, %v1415
        %v1417 = vpop.f32.mrf.mxu0
        %v1418 = vadd.f32 %v1377, %v1417
        %v1419 = vpop.f32.mrf.mxu0
        %v1420 = vpop.f32.mrf.mxu0
        %1421 = vdwg.mxu0
        %p1422 = scmp.lt.s32.totalorder %s19, 2
        %v1423 = vmax.f32 %v1334, 0.0
        %v1424 = vmax.f32 %v1336, 0.0
        %v1425 = vmax.f32 %v1416, 0.0
        %v1426 = vmax.f32 %v1418, 0.0
        %s1427 = scalar_select %p1422, 1, 0
        %v1428 = vstv %s1427
        %vm1429 = vcmp.eq.s32.totalorder %v1428, 1
        %v1430 = vsel %vm1429, %v1423, %v1334
        %v1431 = vsel %vm1429, %v1424, %v1336
        %v1432 = vsel %vm1429, %v1425, %v1416
        %v1433 = vsel %vm1429, %v1426, %v1418
        %v1438 = vcombine.low %v1430, %v1431
        %v1439 = vcombine.low %v1432, %v1433
        %v1441 = vunpack.c.l.s4 1983009808
        %v1442 = vunpack.c.0.s8 %v1441
        %v1443 = vlaneseq
        %v1444 = vshrl.u32 %v1443, 7
        %v1445 = vsub.s32 %v1442, %v1444
        %v1446 = vrot.slane %v1438, %v1445
        %v1448 = vunpack.c.l.s4 1983009808
        %v1449 = vunpack.c.0.s8 %v1448
        %v1450 = vlaneseq
        %v1451 = vshrl.u32 %v1450, 7
        %v1452 = vsub.s32 %v1449, %v1451
        %v1453 = vrot.slane %v1439, %v1452
        %v1454 = vcombine.low %v1446, %v1453
        %1456 = vst [vmem:[%s6] sm:$0xff] %v1454
        %v1457 = vld [vmem:[%s402] sm:$0x77]
        %v1458 = vld [vmem:[%s402 + $0x8] sm:$0x77]
        %v1461 = vcombine.high %v1457, %v1457
        %v1462 = vcombine.high %v1458, %v1458
        %v1465 = vpack.c.bf16 %v1457, %v1457
        %v1466 = vpack.c.bf16 %v1461, %v1461
        %v1467 = vpack.c.bf16 %v1458, %v1458
        %v1468 = vpack.c.bf16 %v1462, %v1462
        %v1469 = vld [vmem:[%s411] sm:$0xff]
        %v1470 = vld [vmem:[%s411 + $0x8] sm:$0xff]
        %v1471 = vld [vmem:[%s411 + $0x10] sm:$0xff]
        %v1472 = vld [vmem:[%s411 + $0x18] sm:$0xff]
        %v1473 = vld [vmem:[%s411 + $0x20] sm:$0xff]
        %v1474 = vld [vmem:[%s411 + $0x28] sm:$0xff]
        %v1475 = vld [vmem:[%s411 + $0x30] sm:$0xff]
        %v1476 = vld [vmem:[%s411 + $0x38] sm:$0xff]
        %v1477 = vld [vmem:[%s411 + $0x40] sm:$0xff]
        %v1478 = vld [vmem:[%s411 + $0x48] sm:$0xff]
        %v1479 = vld [vmem:[%s411 + $0x50] sm:$0xff]
        %v1480 = vld [vmem:[%s411 + $0x58] sm:$0xff]
        %v1481 = vld [vmem:[%s411 + $0x60] sm:$0xff]
        %v1482 = vld [vmem:[%s411 + $0x68] sm:$0xff]
        %v1483 = vld [vmem:[%s411 + $0x70] sm:$0xff]
        %v1484 = vld [vmem:[%s411 + $0x78] sm:$0xff]
        %v1485 = vld [vmem:[%s411 + $0x80] sm:$0xff]
        %v1486 = vld [vmem:[%s411 + $0x88] sm:$0xff]
        %v1487 = vld [vmem:[%s411 + $0x90] sm:$0xff]
        %v1488 = vld [vmem:[%s411 + $0x98] sm:$0xff]
        %v1489 = vld [vmem:[%s411 + $0xa0] sm:$0xff]
        %v1490 = vld [vmem:[%s411 + $0xa8] sm:$0xff]
        %v1491 = vld [vmem:[%s411 + $0xb0] sm:$0xff]
        %v1492 = vld [vmem:[%s411 + $0xb8] sm:$0xff]
        %v1493 = vld [vmem:[%s411 + $0xc0] sm:$0xff]
        %v1494 = vld [vmem:[%s411 + $0xc8] sm:$0xff]
        %v1495 = vld [vmem:[%s411 + $0xd0] sm:$0xff]
        %v1496 = vld [vmem:[%s411 + $0xd8] sm:$0xff]
        %v1497 = vld [vmem:[%s411 + $0xe0] sm:$0xff]
        %v1498 = vld [vmem:[%s411 + $0xe8] sm:$0xff]
        %v1499 = vld [vmem:[%s411 + $0xf0] sm:$0xff]
        %v1500 = vld [vmem:[%s411 + $0xf8] sm:$0xff]
        %v1501 = vld [vmem:[%s411 + $0x100] sm:$0xff]
        %v1502 = vld [vmem:[%s411 + $0x108] sm:$0xff]
        %v1503 = vld [vmem:[%s411 + $0x110] sm:$0xff]
        %v1504 = vld [vmem:[%s411 + $0x118] sm:$0xff]
        %v1505 = vld [vmem:[%s411 + $0x120] sm:$0xff]
        %v1506 = vld [vmem:[%s411 + $0x128] sm:$0xff]
        %v1507 = vld [vmem:[%s411 + $0x130] sm:$0xff]
        %v1508 = vld [vmem:[%s411 + $0x138] sm:$0xff]
        %v1509 = vld [vmem:[%s411 + $0x140] sm:$0xff]
        %v1510 = vld [vmem:[%s411 + $0x148] sm:$0xff]
        %v1511 = vld [vmem:[%s411 + $0x150] sm:$0xff]
        %v1512 = vld [vmem:[%s411 + $0x158] sm:$0xff]
        %v1513 = vld [vmem:[%s411 + $0x160] sm:$0xff]
        %v1514 = vld [vmem:[%s411 + $0x168] sm:$0xff]
        %v1515 = vld [vmem:[%s411 + $0x170] sm:$0xff]
        %v1516 = vld [vmem:[%s411 + $0x178] sm:$0xff]
        %v1517 = vld [vmem:[%s411 + $0x180] sm:$0xff]
        %v1518 = vld [vmem:[%s411 + $0x188] sm:$0xff]
        %v1519 = vld [vmem:[%s411 + $0x190] sm:$0xff]
        %v1520 = vld [vmem:[%s411 + $0x198] sm:$0xff]
        %v1521 = vld [vmem:[%s411 + $0x1a0] sm:$0xff]
        %v1522 = vld [vmem:[%s411 + $0x1a8] sm:$0xff]
        %v1523 = vld [vmem:[%s411 + $0x1b0] sm:$0xff]
        %v1524 = vld [vmem:[%s411 + $0x1b8] sm:$0xff]
        %v1525 = vld [vmem:[%s411 + $0x1c0] sm:$0xff]
        %v1526 = vld [vmem:[%s411 + $0x1c8] sm:$0xff]
        %v1527 = vld [vmem:[%s411 + $0x1d0] sm:$0xff]
        %v1528 = vld [vmem:[%s411 + $0x1d8] sm:$0xff]
        %v1529 = vld [vmem:[%s411 + $0x1e0] sm:$0xff]
        %v1530 = vld [vmem:[%s411 + $0x1e8] sm:$0xff]
        %v1531 = vld [vmem:[%s411 + $0x1f0] sm:$0xff]
        %v1532 = vld [vmem:[%s411 + $0x1f8] sm:$0xff]
        %v1533 = vld [vmem:[%s411 + $0x200] sm:$0xff]
        %v1534 = vld [vmem:[%s411 + $0x208] sm:$0xff]
        %v1535 = vld [vmem:[%s411 + $0x210] sm:$0xff]
        %v1536 = vld [vmem:[%s411 + $0x218] sm:$0xff]
        %v1537 = vld [vmem:[%s411 + $0x220] sm:$0xff]
        %v1538 = vld [vmem:[%s411 + $0x228] sm:$0xff]
        %v1539 = vld [vmem:[%s411 + $0x230] sm:$0xff]
        %v1540 = vld [vmem:[%s411 + $0x238] sm:$0xff]
        %v1541 = vld [vmem:[%s411 + $0x240] sm:$0xff]
        %v1542 = vld [vmem:[%s411 + $0x248] sm:$0xff]
        %v1543 = vld [vmem:[%s411 + $0x250] sm:$0xff]
        %v1544 = vld [vmem:[%s411 + $0x258] sm:$0xff]
        %v1545 = vld [vmem:[%s411 + $0x260] sm:$0xff]
        %v1546 = vld [vmem:[%s411 + $0x268] sm:$0xff]
        %v1547 = vld [vmem:[%s411 + $0x270] sm:$0xff]
        %v1548 = vld [vmem:[%s411 + $0x278] sm:$0xff]
        %v1549 = vld [vmem:[%s411 + $0x280] sm:$0xff]
        %v1550 = vld [vmem:[%s411 + $0x288] sm:$0xff]
        %v1551 = vld [vmem:[%s411 + $0x290] sm:$0xff]
        %v1552 = vld [vmem:[%s411 + $0x298] sm:$0xff]
        %v1553 = vld [vmem:[%s411 + $0x2a0] sm:$0xff]
        %v1554 = vld [vmem:[%s411 + $0x2a8] sm:$0xff]
        %v1555 = vld [vmem:[%s411 + $0x2b0] sm:$0xff]
        %v1556 = vld [vmem:[%s411 + $0x2b8] sm:$0xff]
        %v1557 = vld [vmem:[%s411 + $0x2c0] sm:$0xff]
        %v1558 = vld [vmem:[%s411 + $0x2c8] sm:$0xff]
        %v1559 = vld [vmem:[%s411 + $0x2d0] sm:$0xff]
        %v1560 = vld [vmem:[%s411 + $0x2d8] sm:$0xff]
        %v1561 = vld [vmem:[%s411 + $0x2e0] sm:$0xff]
        %v1562 = vld [vmem:[%s411 + $0x2e8] sm:$0xff]
        %v1563 = vld [vmem:[%s411 + $0x2f0] sm:$0xff]
        %v1564 = vld [vmem:[%s411 + $0x2f8] sm:$0xff]
        %v1565 = vld [vmem:[%s411 + $0x300] sm:$0xff]
        %v1566 = vld [vmem:[%s411 + $0x308] sm:$0xff]
        %v1567 = vld [vmem:[%s411 + $0x310] sm:$0xff]
        %v1568 = vld [vmem:[%s411 + $0x318] sm:$0xff]
        %v1569 = vld [vmem:[%s411 + $0x320] sm:$0xff]
        %v1570 = vld [vmem:[%s411 + $0x328] sm:$0xff]
        %v1571 = vld [vmem:[%s411 + $0x330] sm:$0xff]
        %v1572 = vld [vmem:[%s411 + $0x338] sm:$0xff]
        %v1573 = vld [vmem:[%s411 + $0x340] sm:$0xff]
        %v1574 = vld [vmem:[%s411 + $0x348] sm:$0xff]
        %v1575 = vld [vmem:[%s411 + $0x350] sm:$0xff]
        %v1576 = vld [vmem:[%s411 + $0x358] sm:$0xff]
        %v1577 = vld [vmem:[%s411 + $0x360] sm:$0xff]
        %v1578 = vld [vmem:[%s411 + $0x368] sm:$0xff]
        %v1579 = vld [vmem:[%s411 + $0x370] sm:$0xff]
        %v1580 = vld [vmem:[%s411 + $0x378] sm:$0xff]
        %v1581 = vld [vmem:[%s411 + $0x380] sm:$0xff]
        %v1582 = vld [vmem:[%s411 + $0x388] sm:$0xff]
        %v1583 = vld [vmem:[%s411 + $0x390] sm:$0xff]
        %v1584 = vld [vmem:[%s411 + $0x398] sm:$0xff]
        %v1585 = vld [vmem:[%s411 + $0x3a0] sm:$0xff]
        %v1586 = vld [vmem:[%s411 + $0x3a8] sm:$0xff]
        %v1587 = vld [vmem:[%s411 + $0x3b0] sm:$0xff]
        %v1588 = vld [vmem:[%s411 + $0x3b8] sm:$0xff]
        %v1589 = vld [vmem:[%s411 + $0x3c0] sm:$0xff]
        %v1590 = vld [vmem:[%s411 + $0x3c8] sm:$0xff]
        %v1591 = vld [vmem:[%s411 + $0x3d0] sm:$0xff]
        %v1592 = vld [vmem:[%s411 + $0x3d8] sm:$0xff]
        %v1593 = vld [vmem:[%s411 + $0x3e0] sm:$0xff]
        %v1594 = vld [vmem:[%s411 + $0x3e8] sm:$0xff]
        %v1595 = vld [vmem:[%s411 + $0x3f0] sm:$0xff]
        %v1596 = vld [vmem:[%s411 + $0x3f8] sm:$0xff]
        %v1597 = vld [vmem:[%s411 + $0x400] sm:$0xff]
        %v1598 = vld [vmem:[%s411 + $0x408] sm:$0xff]
        %v1599 = vld [vmem:[%s411 + $0x410] sm:$0xff]
        %v1600 = vld [vmem:[%s411 + $0x418] sm:$0xff]
        %v1601 = vld [vmem:[%s411 + $0x420] sm:$0xff]
        %v1602 = vld [vmem:[%s411 + $0x428] sm:$0xff]
        %v1603 = vld [vmem:[%s411 + $0x430] sm:$0xff]
        %v1604 = vld [vmem:[%s411 + $0x438] sm:$0xff]
        %v1605 = vld [vmem:[%s411 + $0x440] sm:$0xff]
        %v1606 = vld [vmem:[%s411 + $0x448] sm:$0xff]
        %v1607 = vld [vmem:[%s411 + $0x450] sm:$0xff]
        %v1608 = vld [vmem:[%s411 + $0x458] sm:$0xff]
        %v1609 = vld [vmem:[%s411 + $0x460] sm:$0xff]
        %v1610 = vld [vmem:[%s411 + $0x468] sm:$0xff]
        %v1611 = vld [vmem:[%s411 + $0x470] sm:$0xff]
        %v1612 = vld [vmem:[%s411 + $0x478] sm:$0xff]
        %v1613 = vld [vmem:[%s411 + $0x480] sm:$0xff]
        %v1614 = vld [vmem:[%s411 + $0x488] sm:$0xff]
        %v1615 = vld [vmem:[%s411 + $0x490] sm:$0xff]
        %v1616 = vld [vmem:[%s411 + $0x498] sm:$0xff]
        %v1617 = vld [vmem:[%s411 + $0x4a0] sm:$0xff]
        %v1618 = vld [vmem:[%s411 + $0x4a8] sm:$0xff]
        %v1619 = vld [vmem:[%s411 + $0x4b0] sm:$0xff]
        %v1620 = vld [vmem:[%s411 + $0x4b8] sm:$0xff]
        %v1621 = vld [vmem:[%s411 + $0x4c0] sm:$0xff]
        %v1622 = vld [vmem:[%s411 + $0x4c8] sm:$0xff]
        %v1623 = vld [vmem:[%s411 + $0x4d0] sm:$0xff]
        %v1624 = vld [vmem:[%s411 + $0x4d8] sm:$0xff]
        %v1625 = vld [vmem:[%s411 + $0x4e0] sm:$0xff]
        %v1626 = vld [vmem:[%s411 + $0x4e8] sm:$0xff]
        %v1627 = vld [vmem:[%s411 + $0x4f0] sm:$0xff]
        %v1628 = vld [vmem:[%s411 + $0x4f8] sm:$0xff]
        %v1629 = vld [vmem:[%s411 + $0x500] sm:$0xff]
        %v1630 = vld [vmem:[%s411 + $0x508] sm:$0xff]
        %v1631 = vld [vmem:[%s411 + $0x510] sm:$0xff]
        %v1632 = vld [vmem:[%s411 + $0x518] sm:$0xff]
        %v1633 = vld [vmem:[%s411 + $0x520] sm:$0xff]
        %v1634 = vld [vmem:[%s411 + $0x528] sm:$0xff]
        %v1635 = vld [vmem:[%s411 + $0x530] sm:$0xff]
        %v1636 = vld [vmem:[%s411 + $0x538] sm:$0xff]
        %v1637 = vld [vmem:[%s411 + $0x540] sm:$0xff]
        %v1638 = vld [vmem:[%s411 + $0x548] sm:$0xff]
        %v1639 = vld [vmem:[%s411 + $0x550] sm:$0xff]
        %v1640 = vld [vmem:[%s411 + $0x558] sm:$0xff]
        %v1641 = vld [vmem:[%s411 + $0x560] sm:$0xff]
        %v1642 = vld [vmem:[%s411 + $0x568] sm:$0xff]
        %v1643 = vld [vmem:[%s411 + $0x570] sm:$0xff]
        %v1644 = vld [vmem:[%s411 + $0x578] sm:$0xff]
        %v1645 = vld [vmem:[%s411 + $0x580] sm:$0xff]
        %v1646 = vld [vmem:[%s411 + $0x588] sm:$0xff]
        %v1647 = vld [vmem:[%s411 + $0x590] sm:$0xff]
        %v1648 = vld [vmem:[%s411 + $0x598] sm:$0xff]
        %v1649 = vld [vmem:[%s411 + $0x5a0] sm:$0xff]
        %v1650 = vld [vmem:[%s411 + $0x5a8] sm:$0xff]
        %v1651 = vld [vmem:[%s411 + $0x5b0] sm:$0xff]
        %v1652 = vld [vmem:[%s411 + $0x5b8] sm:$0xff]
        %v1653 = vld [vmem:[%s411 + $0x5c0] sm:$0xff]
        %v1654 = vld [vmem:[%s411 + $0x5c8] sm:$0xff]
        %v1655 = vld [vmem:[%s411 + $0x5d0] sm:$0xff]
        %v1656 = vld [vmem:[%s411 + $0x5d8] sm:$0xff]
        %v1657 = vld [vmem:[%s411 + $0x5e0] sm:$0xff]
        %v1658 = vld [vmem:[%s411 + $0x5e8] sm:$0xff]
        %v1659 = vld [vmem:[%s411 + $0x5f0] sm:$0xff]
        %v1660 = vld [vmem:[%s411 + $0x5f8] sm:$0xff]
        %v1661 = vld [vmem:[%s419] sm:$0x3f]
        %v1663 = vlaneseq
        %v1664 = vshrl.u32 %v1663, 7
        %v1665 = vsub.s32 0, %v1664
        %v1666 = vrot.slane %v1661, %v1665
        %v1667 = vlaneseq
        %v1668 = vshrl.u32 %v1667, 7
        %v1669 = vsub.s32 1, %v1668
        %v1670 = vrot.slane %v1661, %v1669
        %v1671 = vlaneseq
        %v1672 = vshrl.u32 %v1671, 7
        %v1673 = vsub.s32 2, %v1672
        %v1674 = vrot.slane %v1661, %v1673
        %v1675 = vlaneseq
        %v1676 = vshrl.u32 %v1675, 7
        %v1677 = vsub.s32 3, %v1676
        %v1678 = vrot.slane %v1661, %v1677
        %v1679 = vlaneseq
        %v1680 = vshrl.u32 %v1679, 7
        %v1681 = vsub.s32 4, %v1680
        %v1682 = vrot.slane %v1661, %v1681
        %v1683 = vlaneseq
        %v1684 = vshrl.u32 %v1683, 7
        %v1685 = vsub.s32 5, %v1684
        %v1686 = vrot.slane %v1661, %v1685
        %v1885 = vunpack.c.l.b16 %v1469
        %v1886 = vunpack.c.h.b16 %v1469
        %v1887 = vunpack.c.l.b16 %v1470
        %v1888 = vunpack.c.h.b16 %v1470
        %v1889 = vunpack.c.l.b16 %v1471
        %v1890 = vunpack.c.h.b16 %v1471
        %v1891 = vunpack.c.l.b16 %v1472
        %v1892 = vunpack.c.h.b16 %v1472
        %v1893 = vunpack.c.l.b16 %v1473
        %v1894 = vunpack.c.h.b16 %v1473
        %v1895 = vunpack.c.l.b16 %v1474
        %v1896 = vunpack.c.h.b16 %v1474
        %v1897 = vunpack.c.l.b16 %v1475
        %v1898 = vunpack.c.h.b16 %v1475
        %v1899 = vunpack.c.l.b16 %v1476
        %v1900 = vunpack.c.h.b16 %v1476
        %v1901 = vunpack.c.l.b16 %v1477
        %v1902 = vunpack.c.h.b16 %v1477
        %v1903 = vunpack.c.l.b16 %v1478
        %v1904 = vunpack.c.h.b16 %v1478
        %v1905 = vunpack.c.l.b16 %v1479
        %v1906 = vunpack.c.h.b16 %v1479
        %v1907 = vunpack.c.l.b16 %v1480
        %v1908 = vunpack.c.h.b16 %v1480
        %v1909 = vunpack.c.l.b16 %v1481
        %v1910 = vunpack.c.h.b16 %v1481
        %v1911 = vunpack.c.l.b16 %v1482
        %v1912 = vunpack.c.h.b16 %v1482
        %v1913 = vunpack.c.l.b16 %v1483
        %v1914 = vunpack.c.h.b16 %v1483
        %v1915 = vunpack.c.l.b16 %v1484
        %v1916 = vunpack.c.h.b16 %v1484
        %v1917 = vunpack.c.l.b16 %v1485
        %v1918 = vunpack.c.h.b16 %v1485
        %v1919 = vunpack.c.l.b16 %v1486
        %v1920 = vunpack.c.h.b16 %v1486
        %v1921 = vunpack.c.l.b16 %v1487
        %v1922 = vunpack.c.h.b16 %v1487
        %v1923 = vunpack.c.l.b16 %v1488
        %v1924 = vunpack.c.h.b16 %v1488
        %v1925 = vunpack.c.l.b16 %v1489
        %v1926 = vunpack.c.h.b16 %v1489
        %v1927 = vunpack.c.l.b16 %v1490
        %v1928 = vunpack.c.h.b16 %v1490
        %v1929 = vunpack.c.l.b16 %v1491
        %v1930 = vunpack.c.h.b16 %v1491
        %v1931 = vunpack.c.l.b16 %v1492
        %v1932 = vunpack.c.h.b16 %v1492
        %v1933 = vunpack.c.l.b16 %v1493
        %v1934 = vunpack.c.h.b16 %v1493
        %v1935 = vunpack.c.l.b16 %v1494
        %v1936 = vunpack.c.h.b16 %v1494
        %v1937 = vunpack.c.l.b16 %v1495
        %v1938 = vunpack.c.h.b16 %v1495
        %v1939 = vunpack.c.l.b16 %v1496
        %v1940 = vunpack.c.h.b16 %v1496
        %v1941 = vunpack.c.l.b16 %v1497
        %v1942 = vunpack.c.h.b16 %v1497
        %v1943 = vunpack.c.l.b16 %v1498
        %v1944 = vunpack.c.h.b16 %v1498
        %v1945 = vunpack.c.l.b16 %v1499
        %v1946 = vunpack.c.h.b16 %v1499
        %v1947 = vunpack.c.l.b16 %v1500
        %v1948 = vunpack.c.h.b16 %v1500
        %v1949 = vunpack.c.l.b16 %v1501
        %v1950 = vunpack.c.h.b16 %v1501
        %v1951 = vunpack.c.l.b16 %v1502
        %v1952 = vunpack.c.h.b16 %v1502
        %v1953 = vunpack.c.l.b16 %v1503
        %v1954 = vunpack.c.h.b16 %v1503
        %v1955 = vunpack.c.l.b16 %v1504
        %v1956 = vunpack.c.h.b16 %v1504
        %v1957 = vunpack.c.l.b16 %v1505
        %v1958 = vunpack.c.h.b16 %v1505
        %v1959 = vunpack.c.l.b16 %v1506
        %v1960 = vunpack.c.h.b16 %v1506
        %v1961 = vunpack.c.l.b16 %v1507
        %v1962 = vunpack.c.h.b16 %v1507
        %v1963 = vunpack.c.l.b16 %v1508
        %v1964 = vunpack.c.h.b16 %v1508
        %v1965 = vunpack.c.l.b16 %v1509
        %v1966 = vunpack.c.h.b16 %v1509
        %v1967 = vunpack.c.l.b16 %v1510
        %v1968 = vunpack.c.h.b16 %v1510
        %v1969 = vunpack.c.l.b16 %v1511
        %v1970 = vunpack.c.h.b16 %v1511
        %v1971 = vunpack.c.l.b16 %v1512
        %v1972 = vunpack.c.h.b16 %v1512
        %v1973 = vunpack.c.l.b16 %v1513
        %v1974 = vunpack.c.h.b16 %v1513
        %v1975 = vunpack.c.l.b16 %v1514
        %v1976 = vunpack.c.h.b16 %v1514
        %v1977 = vunpack.c.l.b16 %v1515
        %v1978 = vunpack.c.h.b16 %v1515
        %v1979 = vunpack.c.l.b16 %v1516
        %v1980 = vunpack.c.h.b16 %v1516
        %v1981 = vunpack.c.l.b16 %v1517
        %v1982 = vunpack.c.h.b16 %v1517
        %v1983 = vunpack.c.l.b16 %v1518
        %v1984 = vunpack.c.h.b16 %v1518
        %v1985 = vunpack.c.l.b16 %v1519
        %v1986 = vunpack.c.h.b16 %v1519
        %v1987 = vunpack.c.l.b16 %v1520
        %v1988 = vunpack.c.h.b16 %v1520
        %v1989 = vunpack.c.l.b16 %v1521
        %v1990 = vunpack.c.h.b16 %v1521
        %v1991 = vunpack.c.l.b16 %v1522
        %v1992 = vunpack.c.h.b16 %v1522
        %v1993 = vunpack.c.l.b16 %v1523
        %v1994 = vunpack.c.h.b16 %v1523
        %v1995 = vunpack.c.l.b16 %v1524
        %v1996 = vunpack.c.h.b16 %v1524
        %v1997 = vunpack.c.l.b16 %v1525
        %v1998 = vunpack.c.h.b16 %v1525
        %v1999 = vunpack.c.l.b16 %v1526
        %v2000 = vunpack.c.h.b16 %v1526
        %v2001 = vunpack.c.l.b16 %v1527
        %v2002 = vunpack.c.h.b16 %v1527
        %v2003 = vunpack.c.l.b16 %v1528
        %v2004 = vunpack.c.h.b16 %v1528
        %v2005 = vunpack.c.l.b16 %v1529
        %v2006 = vunpack.c.h.b16 %v1529
        %v2007 = vunpack.c.l.b16 %v1530
        %v2008 = vunpack.c.h.b16 %v1530
        %v2009 = vunpack.c.l.b16 %v1531
        %v2010 = vunpack.c.h.b16 %v1531
        %v2011 = vunpack.c.l.b16 %v1532
        %v2012 = vunpack.c.h.b16 %v1532
        %v2013 = vunpack.c.l.b16 %v1533
        %v2014 = vunpack.c.h.b16 %v1533
        %v2015 = vunpack.c.l.b16 %v1534
        %v2016 = vunpack.c.h.b16 %v1534
        %v2017 = vunpack.c.l.b16 %v1535
        %v2018 = vunpack.c.h.b16 %v1535
        %v2019 = vunpack.c.l.b16 %v1536
        %v2020 = vunpack.c.h.b16 %v1536
        %v2021 = vunpack.c.l.b16 %v1537
        %v2022 = vunpack.c.h.b16 %v1537
        %v2023 = vunpack.c.l.b16 %v1538
        %v2024 = vunpack.c.h.b16 %v1538
        %v2025 = vunpack.c.l.b16 %v1539
        %v2026 = vunpack.c.h.b16 %v1539
        %v2027 = vunpack.c.l.b16 %v1540
        %v2028 = vunpack.c.h.b16 %v1540
        %v2029 = vunpack.c.l.b16 %v1541
        %v2030 = vunpack.c.h.b16 %v1541
        %v2031 = vunpack.c.l.b16 %v1542
        %v2032 = vunpack.c.h.b16 %v1542
        %v2033 = vunpack.c.l.b16 %v1543
        %v2034 = vunpack.c.h.b16 %v1543
        %v2035 = vunpack.c.l.b16 %v1544
        %v2036 = vunpack.c.h.b16 %v1544
        %v2037 = vunpack.c.l.b16 %v1545
        %v2038 = vunpack.c.h.b16 %v1545
        %v2039 = vunpack.c.l.b16 %v1546
        %v2040 = vunpack.c.h.b16 %v1546
        %v2041 = vunpack.c.l.b16 %v1547
        %v2042 = vunpack.c.h.b16 %v1547
        %v2043 = vunpack.c.l.b16 %v1548
        %v2044 = vunpack.c.h.b16 %v1548
        %v2045 = vunpack.c.l.b16 %v1549
        %v2046 = vunpack.c.h.b16 %v1549
        %v2047 = vunpack.c.l.b16 %v1550
        %v2048 = vunpack.c.h.b16 %v1550
        %v2049 = vunpack.c.l.b16 %v1551
        %v2050 = vunpack.c.h.b16 %v1551
        %v2051 = vunpack.c.l.b16 %v1552
        %v2052 = vunpack.c.h.b16 %v1552
        %v2053 = vunpack.c.l.b16 %v1553
        %v2054 = vunpack.c.h.b16 %v1553
        %v2055 = vunpack.c.l.b16 %v1554
        %v2056 = vunpack.c.h.b16 %v1554
        %v2057 = vunpack.c.l.b16 %v1555
        %v2058 = vunpack.c.h.b16 %v1555
        %v2059 = vunpack.c.l.b16 %v1556
        %v2060 = vunpack.c.h.b16 %v1556
        %v2061 = vunpack.c.l.b16 %v1557
        %v2062 = vunpack.c.h.b16 %v1557
        %v2063 = vunpack.c.l.b16 %v1558
        %v2064 = vunpack.c.h.b16 %v1558
        %v2065 = vunpack.c.l.b16 %v1559
        %v2066 = vunpack.c.h.b16 %v1559
        %v2067 = vunpack.c.l.b16 %v1560
        %v2068 = vunpack.c.h.b16 %v1560
        %v2069 = vunpack.c.l.b16 %v1561
        %v2070 = vunpack.c.h.b16 %v1561
        %v2071 = vunpack.c.l.b16 %v1562
        %v2072 = vunpack.c.h.b16 %v1562
        %v2073 = vunpack.c.l.b16 %v1563
        %v2074 = vunpack.c.h.b16 %v1563
        %v2075 = vunpack.c.l.b16 %v1564
        %v2076 = vunpack.c.h.b16 %v1564
        %v2077 = vunpack.c.l.b16 %v1565
        %v2078 = vunpack.c.h.b16 %v1565
        %v2079 = vunpack.c.l.b16 %v1566
        %v2080 = vunpack.c.h.b16 %v1566
        %v2081 = vunpack.c.l.b16 %v1567
        %v2082 = vunpack.c.h.b16 %v1567
        %v2083 = vunpack.c.l.b16 %v1568
        %v2084 = vunpack.c.h.b16 %v1568
        %v2085 = vunpack.c.l.b16 %v1569
        %v2086 = vunpack.c.h.b16 %v1569
        %v2087 = vunpack.c.l.b16 %v1570
        %v2088 = vunpack.c.h.b16 %v1570
        %v2089 = vunpack.c.l.b16 %v1571
        %v2090 = vunpack.c.h.b16 %v1571
        %v2091 = vunpack.c.l.b16 %v1572
        %v2092 = vunpack.c.h.b16 %v1572
        %v2093 = vunpack.c.l.b16 %v1573
        %v2094 = vunpack.c.h.b16 %v1573
        %v2095 = vunpack.c.l.b16 %v1574
        %v2096 = vunpack.c.h.b16 %v1574
        %v2097 = vunpack.c.l.b16 %v1575
        %v2098 = vunpack.c.h.b16 %v1575
        %v2099 = vunpack.c.l.b16 %v1576
        %v2100 = vunpack.c.h.b16 %v1576
        %v2101 = vunpack.c.l.b16 %v1577
        %v2102 = vunpack.c.h.b16 %v1577
        %v2103 = vunpack.c.l.b16 %v1578
        %v2104 = vunpack.c.h.b16 %v1578
        %v2105 = vunpack.c.l.b16 %v1579
        %v2106 = vunpack.c.h.b16 %v1579
        %v2107 = vunpack.c.l.b16 %v1580
        %v2108 = vunpack.c.h.b16 %v1580
        %v2109 = vunpack.c.l.b16 %v1581
        %v2110 = vunpack.c.h.b16 %v1581
        %v2111 = vunpack.c.l.b16 %v1582
        %v2112 = vunpack.c.h.b16 %v1582
        %v2113 = vunpack.c.l.b16 %v1583
        %v2114 = vunpack.c.h.b16 %v1583
        %v2115 = vunpack.c.l.b16 %v1584
        %v2116 = vunpack.c.h.b16 %v1584
        %v2117 = vunpack.c.l.b16 %v1585
        %v2118 = vunpack.c.h.b16 %v1585
        %v2119 = vunpack.c.l.b16 %v1586
        %v2120 = vunpack.c.h.b16 %v1586
        %v2121 = vunpack.c.l.b16 %v1587
        %v2122 = vunpack.c.h.b16 %v1587
        %v2123 = vunpack.c.l.b16 %v1588
        %v2124 = vunpack.c.h.b16 %v1588
        %v2125 = vunpack.c.l.b16 %v1589
        %v2126 = vunpack.c.h.b16 %v1589
        %v2127 = vunpack.c.l.b16 %v1590
        %v2128 = vunpack.c.h.b16 %v1590
        %v2129 = vunpack.c.l.b16 %v1591
        %v2130 = vunpack.c.h.b16 %v1591
        %v2131 = vunpack.c.l.b16 %v1592
        %v2132 = vunpack.c.h.b16 %v1592
        %v2133 = vunpack.c.l.b16 %v1593
        %v2134 = vunpack.c.h.b16 %v1593
        %v2135 = vunpack.c.l.b16 %v1594
        %v2136 = vunpack.c.h.b16 %v1594
        %v2137 = vunpack.c.l.b16 %v1595
        %v2138 = vunpack.c.h.b16 %v1595
        %v2139 = vunpack.c.l.b16 %v1596
        %v2140 = vunpack.c.h.b16 %v1596
        %v2141 = vunpack.c.l.b16 %v1597
        %v2142 = vunpack.c.h.b16 %v1597
        %v2143 = vunpack.c.l.b16 %v1598
        %v2144 = vunpack.c.h.b16 %v1598
        %v2145 = vunpack.c.l.b16 %v1599
        %v2146 = vunpack.c.h.b16 %v1599
        %v2147 = vunpack.c.l.b16 %v1600
        %v2148 = vunpack.c.h.b16 %v1600
        %v2149 = vunpack.c.l.b16 %v1601
        %v2150 = vunpack.c.h.b16 %v1601
        %v2151 = vunpack.c.l.b16 %v1602
        %v2152 = vunpack.c.h.b16 %v1602
        %v2153 = vunpack.c.l.b16 %v1603
        %v2154 = vunpack.c.h.b16 %v1603
        %v2155 = vunpack.c.l.b16 %v1604
        %v2156 = vunpack.c.h.b16 %v1604
        %v2157 = vunpack.c.l.b16 %v1605
        %v2158 = vunpack.c.h.b16 %v1605
        %v2159 = vunpack.c.l.b16 %v1606
        %v2160 = vunpack.c.h.b16 %v1606
        %v2161 = vunpack.c.l.b16 %v1607
        %v2162 = vunpack.c.h.b16 %v1607
        %v2163 = vunpack.c.l.b16 %v1608
        %v2164 = vunpack.c.h.b16 %v1608
        %v2165 = vunpack.c.l.b16 %v1609
        %v2166 = vunpack.c.h.b16 %v1609
        %v2167 = vunpack.c.l.b16 %v1610
        %v2168 = vunpack.c.h.b16 %v1610
        %v2169 = vunpack.c.l.b16 %v1611
        %v2170 = vunpack.c.h.b16 %v1611
        %v2171 = vunpack.c.l.b16 %v1612
        %v2172 = vunpack.c.h.b16 %v1612
        %v2173 = vunpack.c.l.b16 %v1613
        %v2174 = vunpack.c.h.b16 %v1613
        %v2175 = vunpack.c.l.b16 %v1614
        %v2176 = vunpack.c.h.b16 %v1614
        %v2177 = vunpack.c.l.b16 %v1615
        %v2178 = vunpack.c.h.b16 %v1615
        %v2179 = vunpack.c.l.b16 %v1616
        %v2180 = vunpack.c.h.b16 %v1616
        %v2181 = vunpack.c.l.b16 %v1617
        %v2182 = vunpack.c.h.b16 %v1617
        %v2183 = vunpack.c.l.b16 %v1618
        %v2184 = vunpack.c.h.b16 %v1618
        %v2185 = vunpack.c.l.b16 %v1619
        %v2186 = vunpack.c.h.b16 %v1619
        %v2187 = vunpack.c.l.b16 %v1620
        %v2188 = vunpack.c.h.b16 %v1620
        %v2189 = vunpack.c.l.b16 %v1621
        %v2190 = vunpack.c.h.b16 %v1621
        %v2191 = vunpack.c.l.b16 %v1622
        %v2192 = vunpack.c.h.b16 %v1622
        %v2193 = vunpack.c.l.b16 %v1623
        %v2194 = vunpack.c.h.b16 %v1623
        %v2195 = vunpack.c.l.b16 %v1624
        %v2196 = vunpack.c.h.b16 %v1624
        %v2197 = vunpack.c.l.b16 %v1625
        %v2198 = vunpack.c.h.b16 %v1625
        %v2199 = vunpack.c.l.b16 %v1626
        %v2200 = vunpack.c.h.b16 %v1626
        %v2201 = vunpack.c.l.b16 %v1627
        %v2202 = vunpack.c.h.b16 %v1627
        %v2203 = vunpack.c.l.b16 %v1628
        %v2204 = vunpack.c.h.b16 %v1628
        %v2205 = vunpack.c.l.b16 %v1629
        %v2206 = vunpack.c.h.b16 %v1629
        %v2207 = vunpack.c.l.b16 %v1630
        %v2208 = vunpack.c.h.b16 %v1630
        %v2209 = vunpack.c.l.b16 %v1631
        %v2210 = vunpack.c.h.b16 %v1631
        %v2211 = vunpack.c.l.b16 %v1632
        %v2212 = vunpack.c.h.b16 %v1632
        %v2213 = vunpack.c.l.b16 %v1633
        %v2214 = vunpack.c.h.b16 %v1633
        %v2215 = vunpack.c.l.b16 %v1634
        %v2216 = vunpack.c.h.b16 %v1634
        %v2217 = vunpack.c.l.b16 %v1635
        %v2218 = vunpack.c.h.b16 %v1635
        %v2219 = vunpack.c.l.b16 %v1636
        %v2220 = vunpack.c.h.b16 %v1636
        %v2221 = vunpack.c.l.b16 %v1637
        %v2222 = vunpack.c.h.b16 %v1637
        %v2223 = vunpack.c.l.b16 %v1638
        %v2224 = vunpack.c.h.b16 %v1638
        %v2225 = vunpack.c.l.b16 %v1639
        %v2226 = vunpack.c.h.b16 %v1639
        %v2227 = vunpack.c.l.b16 %v1640
        %v2228 = vunpack.c.h.b16 %v1640
        %v2229 = vunpack.c.l.b16 %v1641
        %v2230 = vunpack.c.h.b16 %v1641
        %v2231 = vunpack.c.l.b16 %v1642
        %v2232 = vunpack.c.h.b16 %v1642
        %v2233 = vunpack.c.l.b16 %v1643
        %v2234 = vunpack.c.h.b16 %v1643
        %v2235 = vunpack.c.l.b16 %v1644
        %v2236 = vunpack.c.h.b16 %v1644
        %v2237 = vunpack.c.l.b16 %v1645
        %v2238 = vunpack.c.h.b16 %v1645
        %v2239 = vunpack.c.l.b16 %v1646
        %v2240 = vunpack.c.h.b16 %v1646
        %v2241 = vunpack.c.l.b16 %v1647
        %v2242 = vunpack.c.h.b16 %v1647
        %v2243 = vunpack.c.l.b16 %v1648
        %v2244 = vunpack.c.h.b16 %v1648
        %v2245 = vunpack.c.l.b16 %v1649
        %v2246 = vunpack.c.h.b16 %v1649
        %v2247 = vunpack.c.l.b16 %v1650
        %v2248 = vunpack.c.h.b16 %v1650
        %v2249 = vunpack.c.l.b16 %v1651
        %v2250 = vunpack.c.h.b16 %v1651
        %v2251 = vunpack.c.l.b16 %v1652
        %v2252 = vunpack.c.h.b16 %v1652
        %v2253 = vunpack.c.l.b16 %v1653
        %v2254 = vunpack.c.h.b16 %v1653
        %v2255 = vunpack.c.l.b16 %v1654
        %v2256 = vunpack.c.h.b16 %v1654
        %v2257 = vunpack.c.l.b16 %v1655
        %v2258 = vunpack.c.h.b16 %v1655
        %v2259 = vunpack.c.l.b16 %v1656
        %v2260 = vunpack.c.h.b16 %v1656
        %v2261 = vunpack.c.l.b16 %v1657
        %v2262 = vunpack.c.h.b16 %v1657
        %v2263 = vunpack.c.l.b16 %v1658
        %v2264 = vunpack.c.h.b16 %v1658
        %v2265 = vunpack.c.l.b16 %v1659
        %v2266 = vunpack.c.h.b16 %v1659
        %v2267 = vunpack.c.l.b16 %v1660
        %v2268 = vunpack.c.h.b16 %v1660
        %v2269 = vpack.c.b16 %v1891, %v1885
        %v2270 = vpack.c.b16 %v1892, %v1886
        %v2271 = vpack.c.b16 %v1893, %v1887
        %v2272 = vpack.c.b16 %v1894, %v1888
        %v2273 = vpack.c.b16 %v1895, %v1889
        %v2274 = vpack.c.b16 %v1896, %v1890
        %v2275 = vpack.c.b16 %v1903, %v1897
        %v2276 = vpack.c.b16 %v1904, %v1898
        %v2277 = vpack.c.b16 %v1905, %v1899
        %v2278 = vpack.c.b16 %v1906, %v1900
        %v2279 = vpack.c.b16 %v1907, %v1901
        %v2280 = vpack.c.b16 %v1908, %v1902
        %v2281 = vpack.c.b16 %v1915, %v1909
        %v2282 = vpack.c.b16 %v1916, %v1910
        %v2283 = vpack.c.b16 %v1917, %v1911
        %v2284 = vpack.c.b16 %v1918, %v1912
        %v2285 = vpack.c.b16 %v1919, %v1913
        %v2286 = vpack.c.b16 %v1920, %v1914
        %v2287 = vpack.c.b16 %v1927, %v1921
        %v2288 = vpack.c.b16 %v1928, %v1922
        %v2289 = vpack.c.b16 %v1929, %v1923
        %v2290 = vpack.c.b16 %v1930, %v1924
        %v2291 = vpack.c.b16 %v1931, %v1925
        %v2292 = vpack.c.b16 %v1932, %v1926
        %v2293 = vpack.c.b16 %v1939, %v1933
        %v2294 = vpack.c.b16 %v1940, %v1934
        %v2295 = vpack.c.b16 %v1941, %v1935
        %v2296 = vpack.c.b16 %v1942, %v1936
        %v2297 = vpack.c.b16 %v1943, %v1937
        %v2298 = vpack.c.b16 %v1944, %v1938
        %v2299 = vpack.c.b16 %v1951, %v1945
        %v2300 = vpack.c.b16 %v1952, %v1946
        %v2301 = vpack.c.b16 %v1953, %v1947
        %v2302 = vpack.c.b16 %v1954, %v1948
        %v2303 = vpack.c.b16 %v1955, %v1949
        %v2304 = vpack.c.b16 %v1956, %v1950
        %v2305 = vpack.c.b16 %v1963, %v1957
        %v2306 = vpack.c.b16 %v1964, %v1958
        %v2307 = vpack.c.b16 %v1965, %v1959
        %v2308 = vpack.c.b16 %v1966, %v1960
        %v2309 = vpack.c.b16 %v1967, %v1961
        %v2310 = vpack.c.b16 %v1968, %v1962
        %v2311 = vpack.c.b16 %v1975, %v1969
        %v2312 = vpack.c.b16 %v1976, %v1970
        %v2313 = vpack.c.b16 %v1977, %v1971
        %v2314 = vpack.c.b16 %v1978, %v1972
        %v2315 = vpack.c.b16 %v1979, %v1973
        %v2316 = vpack.c.b16 %v1980, %v1974
        %v2317 = vpack.c.b16 %v1987, %v1981
        %v2318 = vpack.c.b16 %v1988, %v1982
        %v2319 = vpack.c.b16 %v1989, %v1983
        %v2320 = vpack.c.b16 %v1990, %v1984
        %v2321 = vpack.c.b16 %v1991, %v1985
        %v2322 = vpack.c.b16 %v1992, %v1986
        %v2323 = vpack.c.b16 %v1999, %v1993
        %v2324 = vpack.c.b16 %v2000, %v1994
        %v2325 = vpack.c.b16 %v2001, %v1995
        %v2326 = vpack.c.b16 %v2002, %v1996
        %v2327 = vpack.c.b16 %v2003, %v1997
        %v2328 = vpack.c.b16 %v2004, %v1998
        %v2329 = vpack.c.b16 %v2011, %v2005
        %v2330 = vpack.c.b16 %v2012, %v2006
        %v2331 = vpack.c.b16 %v2013, %v2007
        %v2332 = vpack.c.b16 %v2014, %v2008
        %v2333 = vpack.c.b16 %v2015, %v2009
        %v2334 = vpack.c.b16 %v2016, %v2010
        %v2335 = vpack.c.b16 %v2023, %v2017
        %v2336 = vpack.c.b16 %v2024, %v2018
        %v2337 = vpack.c.b16 %v2025, %v2019
        %v2338 = vpack.c.b16 %v2026, %v2020
        %v2339 = vpack.c.b16 %v2027, %v2021
        %v2340 = vpack.c.b16 %v2028, %v2022
        %v2341 = vpack.c.b16 %v2035, %v2029
        %v2342 = vpack.c.b16 %v2036, %v2030
        %v2343 = vpack.c.b16 %v2037, %v2031
        %v2344 = vpack.c.b16 %v2038, %v2032
        %v2345 = vpack.c.b16 %v2039, %v2033
        %v2346 = vpack.c.b16 %v2040, %v2034
        %v2347 = vpack.c.b16 %v2047, %v2041
        %v2348 = vpack.c.b16 %v2048, %v2042
        %v2349 = vpack.c.b16 %v2049, %v2043
        %v2350 = vpack.c.b16 %v2050, %v2044
        %v2351 = vpack.c.b16 %v2051, %v2045
        %v2352 = vpack.c.b16 %v2052, %v2046
        %v2353 = vpack.c.b16 %v2059, %v2053
        %v2354 = vpack.c.b16 %v2060, %v2054
        %v2355 = vpack.c.b16 %v2061, %v2055
        %v2356 = vpack.c.b16 %v2062, %v2056
        %v2357 = vpack.c.b16 %v2063, %v2057
        %v2358 = vpack.c.b16 %v2064, %v2058
        %v2359 = vpack.c.b16 %v2071, %v2065
        %v2360 = vpack.c.b16 %v2072, %v2066
        %v2361 = vpack.c.b16 %v2073, %v2067
        %v2362 = vpack.c.b16 %v2074, %v2068
        %v2363 = vpack.c.b16 %v2075, %v2069
        %v2364 = vpack.c.b16 %v2076, %v2070
        %v2365 = vpack.c.b16 %v2083, %v2077
        %v2366 = vpack.c.b16 %v2084, %v2078
        %v2367 = vpack.c.b16 %v2085, %v2079
        %v2368 = vpack.c.b16 %v2086, %v2080
        %v2369 = vpack.c.b16 %v2087, %v2081
        %v2370 = vpack.c.b16 %v2088, %v2082
        %v2371 = vpack.c.b16 %v2095, %v2089
        %v2372 = vpack.c.b16 %v2096, %v2090
        %v2373 = vpack.c.b16 %v2097, %v2091
        %v2374 = vpack.c.b16 %v2098, %v2092
        %v2375 = vpack.c.b16 %v2099, %v2093
        %v2376 = vpack.c.b16 %v2100, %v2094
        %v2377 = vpack.c.b16 %v2107, %v2101
        %v2378 = vpack.c.b16 %v2108, %v2102
        %v2379 = vpack.c.b16 %v2109, %v2103
        %v2380 = vpack.c.b16 %v2110, %v2104
        %v2381 = vpack.c.b16 %v2111, %v2105
        %v2382 = vpack.c.b16 %v2112, %v2106
        %v2383 = vpack.c.b16 %v2119, %v2113
        %v2384 = vpack.c.b16 %v2120, %v2114
        %v2385 = vpack.c.b16 %v2121, %v2115
        %v2386 = vpack.c.b16 %v2122, %v2116
        %v2387 = vpack.c.b16 %v2123, %v2117
        %v2388 = vpack.c.b16 %v2124, %v2118
        %v2389 = vpack.c.b16 %v2131, %v2125
        %v2390 = vpack.c.b16 %v2132, %v2126
        %v2391 = vpack.c.b16 %v2133, %v2127
        %v2392 = vpack.c.b16 %v2134, %v2128
        %v2393 = vpack.c.b16 %v2135, %v2129
        %v2394 = vpack.c.b16 %v2136, %v2130
        %v2395 = vpack.c.b16 %v2143, %v2137
        %v2396 = vpack.c.b16 %v2144, %v2138
        %v2397 = vpack.c.b16 %v2145, %v2139
        %v2398 = vpack.c.b16 %v2146, %v2140
        %v2399 = vpack.c.b16 %v2147, %v2141
        %v2400 = vpack.c.b16 %v2148, %v2142
        %v2401 = vpack.c.b16 %v2155, %v2149
        %v2402 = vpack.c.b16 %v2156, %v2150
        %v2403 = vpack.c.b16 %v2157, %v2151
        %v2404 = vpack.c.b16 %v2158, %v2152
        %v2405 = vpack.c.b16 %v2159, %v2153
        %v2406 = vpack.c.b16 %v2160, %v2154
        %v2407 = vpack.c.b16 %v2167, %v2161
        %v2408 = vpack.c.b16 %v2168, %v2162
        %v2409 = vpack.c.b16 %v2169, %v2163
        %v2410 = vpack.c.b16 %v2170, %v2164
        %v2411 = vpack.c.b16 %v2171, %v2165
        %v2412 = vpack.c.b16 %v2172, %v2166
        %v2413 = vpack.c.b16 %v2179, %v2173
        %v2414 = vpack.c.b16 %v2180, %v2174
        %v2415 = vpack.c.b16 %v2181, %v2175
        %v2416 = vpack.c.b16 %v2182, %v2176
        %v2417 = vpack.c.b16 %v2183, %v2177
        %v2418 = vpack.c.b16 %v2184, %v2178
        %v2419 = vpack.c.b16 %v2191, %v2185
        %v2420 = vpack.c.b16 %v2192, %v2186
        %v2421 = vpack.c.b16 %v2193, %v2187
        %v2422 = vpack.c.b16 %v2194, %v2188
        %v2423 = vpack.c.b16 %v2195, %v2189
        %v2424 = vpack.c.b16 %v2196, %v2190
        %v2425 = vpack.c.b16 %v2203, %v2197
        %v2426 = vpack.c.b16 %v2204, %v2198
        %v2427 = vpack.c.b16 %v2205, %v2199
        %v2428 = vpack.c.b16 %v2206, %v2200
        %v2429 = vpack.c.b16 %v2207, %v2201
        %v2430 = vpack.c.b16 %v2208, %v2202
        %v2431 = vpack.c.b16 %v2215, %v2209
        %v2432 = vpack.c.b16 %v2216, %v2210
        %v2433 = vpack.c.b16 %v2217, %v2211
        %v2434 = vpack.c.b16 %v2218, %v2212
        %v2435 = vpack.c.b16 %v2219, %v2213
        %v2436 = vpack.c.b16 %v2220, %v2214
        %v2437 = vpack.c.b16 %v2227, %v2221
        %v2438 = vpack.c.b16 %v2228, %v2222
        %v2439 = vpack.c.b16 %v2229, %v2223
        %v2440 = vpack.c.b16 %v2230, %v2224
        %v2441 = vpack.c.b16 %v2231, %v2225
        %v2442 = vpack.c.b16 %v2232, %v2226
        %v2443 = vpack.c.b16 %v2239, %v2233
        %v2444 = vpack.c.b16 %v2240, %v2234
        %v2445 = vpack.c.b16 %v2241, %v2235
        %v2446 = vpack.c.b16 %v2242, %v2236
        %v2447 = vpack.c.b16 %v2243, %v2237
        %v2448 = vpack.c.b16 %v2244, %v2238
        %v2449 = vpack.c.b16 %v2251, %v2245
        %v2450 = vpack.c.b16 %v2252, %v2246
        %v2451 = vpack.c.b16 %v2253, %v2247
        %v2452 = vpack.c.b16 %v2254, %v2248
        %v2453 = vpack.c.b16 %v2255, %v2249
        %v2454 = vpack.c.b16 %v2256, %v2250
        %v2455 = vpack.c.b16 %v2263, %v2257
        %v2456 = vpack.c.b16 %v2264, %v2258
        %v2457 = vpack.c.b16 %v2265, %v2259
        %v2458 = vpack.c.b16 %v2266, %v2260
        %v2459 = vpack.c.b16 %v2267, %v2261
        %v2460 = vpack.c.b16 %v2268, %v2262
        %2653 = vmatprep.subr.bf16.mxu0 %v2312
        %2654 = vmatpush1.bf16.msra.mxu0 %v2311
        %2655 = vmatprep.subr.bf16.mxu0 %v2306
        %2656 = vmatpush1.bf16.msra.mxu0 %v2305
        %2657 = vmatprep.subr.bf16.mxu0 %v2300
        %2658 = vmatpush1.bf16.msra.mxu0 %v2299
        %2659 = vmatprep.subr.bf16.mxu0 %v2294
        %2660 = vmatpush1.bf16.msra.mxu0 %v2293
        %2661 = vmatprep.subr.bf16.mxu0 %v2288
        %2662 = vmatpush1.bf16.msra.mxu0 %v2287
        %2663 = vmatprep.subr.bf16.mxu0 %v2282
        %2664 = vmatpush1.bf16.msra.mxu0 %v2281
        %2665 = vmatprep.subr.bf16.mxu0 %v2276
        %2666 = vmatpush1.bf16.msra.mxu0 %v2275
        %2667 = vmatprep.subr.bf16.mxu0 %v2270
        %2668 = vmatpush1.bf16.msra.mxu0 %v2269
        %2669 = vmatprep.subr.bf16.mxu0 %v2360
        %2670 = vmatpush2.bf16.msra.mxu0 %v2359
        %2671 = vmatprep.subr.bf16.mxu0 %v2354
        %2672 = vmatpush2.bf16.msra.mxu0 %v2353
        %2673 = vmatprep.subr.bf16.mxu0 %v2348
        %2674 = vmatpush2.bf16.msra.mxu0 %v2347
        %2675 = vmatprep.subr.bf16.mxu0 %v2342
        %2676 = vmatpush2.bf16.msra.mxu0 %v2341
        %2677 = vmatprep.subr.bf16.mxu0 %v2336
        %2678 = vmatpush2.bf16.msra.mxu0 %v2335
        %2679 = vmatprep.subr.bf16.mxu0 %v2330
        %2680 = vmatpush2.bf16.msra.mxu0 %v2329
        %2681 = vmatprep.subr.bf16.mxu0 %v2324
        %2682 = vmatpush2.bf16.msra.mxu0 %v2323
        %2683 = vmatprep.subr.bf16.mxu0 %v2318
        %2684 = vmatpush2.bf16.msra.mxu0 %v2317
        %2685 = vmatprep.mubr.bf16.mxu0 %v1466
        %2686 = vmatmul.mubr.bf16.gmra.mxu0 %v1465
        %v2687 = vpop.f32.mrf.mxu0
        %v2688 = vadd.f32 %v1666, %v2687
        %v2689 = vpop.f32.mrf.mxu0
        %v2690 = vadd.f32 %v1670, %v2689
        %v2691 = vpop.f32.mrf.mxu0
        %v2692 = vpop.f32.mrf.mxu0
        %2693 = vdwg.mxu0
        %2694 = vmatprep.subr.bf16.mxu0 %v2408
        %2695 = vmatpush1.bf16.msra.mxu0 %v2407
        %2696 = vmatprep.subr.bf16.mxu0 %v2402
        %2697 = vmatpush1.bf16.msra.mxu0 %v2401
        %2698 = vmatprep.subr.bf16.mxu0 %v2396
        %2699 = vmatpush1.bf16.msra.mxu0 %v2395
        %2700 = vmatprep.subr.bf16.mxu0 %v2390
        %2701 = vmatpush1.bf16.msra.mxu0 %v2389
        %2702 = vmatprep.subr.bf16.mxu0 %v2384
        %2703 = vmatpush1.bf16.msra.mxu0 %v2383
        %2704 = vmatprep.subr.bf16.mxu0 %v2378
        %2705 = vmatpush1.bf16.msra.mxu0 %v2377
        %2706 = vmatprep.subr.bf16.mxu0 %v2372
        %2707 = vmatpush1.bf16.msra.mxu0 %v2371
        %2708 = vmatprep.subr.bf16.mxu0 %v2366
        %2709 = vmatpush1.bf16.msra.mxu0 %v2365
        %2710 = vmatprep.subr.bf16.mxu0 %v2456
        %2711 = vmatpush2.bf16.msra.mxu0 %v2455
        %2712 = vmatprep.subr.bf16.mxu0 %v2450
        %2713 = vmatpush2.bf16.msra.mxu0 %v2449
        %2714 = vmatprep.subr.bf16.mxu0 %v2444
        %2715 = vmatpush2.bf16.msra.mxu0 %v2443
        %2716 = vmatprep.subr.bf16.mxu0 %v2438
        %2717 = vmatpush2.bf16.msra.mxu0 %v2437
        %2718 = vmatprep.subr.bf16.mxu0 %v2432
        %2719 = vmatpush2.bf16.msra.mxu0 %v2431
        %2720 = vmatprep.subr.bf16.mxu0 %v2426
        %2721 = vmatpush2.bf16.msra.mxu0 %v2425
        %2722 = vmatprep.subr.bf16.mxu0 %v2420
        %2723 = vmatpush2.bf16.msra.mxu0 %v2419
        %2724 = vmatprep.subr.bf16.mxu0 %v2414
        %2725 = vmatpush2.bf16.msra.mxu0 %v2413
        %2726 = vmatprep.mubr.bf16.mxu0 %v1468
        %2727 = vmatmul.mubr.bf16.gmra.mxu0 %v1467
        %v2728 = vpop.f32.mrf.mxu0
        %v2729 = vadd.f32 %v2688, %v2728
        %v2730 = vpop.f32.mrf.mxu0
        %v2731 = vadd.f32 %v2690, %v2730
        %v2732 = vpop.f32.mrf.mxu0
        %v2733 = vpop.f32.mrf.mxu0
        %2734 = vdwg.mxu0
        %2735 = vmatprep.subr.bf16.mxu0 %v2314
        %2736 = vmatpush1.bf16.msra.mxu0 %v2313
        %2737 = vmatprep.subr.bf16.mxu0 %v2308
        %2738 = vmatpush1.bf16.msra.mxu0 %v2307
        %2739 = vmatprep.subr.bf16.mxu0 %v2302
        %2740 = vmatpush1.bf16.msra.mxu0 %v2301
        %2741 = vmatprep.subr.bf16.mxu0 %v2296
        %2742 = vmatpush1.bf16.msra.mxu0 %v2295
        %2743 = vmatprep.subr.bf16.mxu0 %v2290
        %2744 = vmatpush1.bf16.msra.mxu0 %v2289
        %2745 = vmatprep.subr.bf16.mxu0 %v2284
        %2746 = vmatpush1.bf16.msra.mxu0 %v2283
        %2747 = vmatprep.subr.bf16.mxu0 %v2278
        %2748 = vmatpush1.bf16.msra.mxu0 %v2277
        %2749 = vmatprep.subr.bf16.mxu0 %v2272
        %2750 = vmatpush1.bf16.msra.mxu0 %v2271
        %2751 = vmatprep.subr.bf16.mxu0 %v2362
        %2752 = vmatpush2.bf16.msra.mxu0 %v2361
        %2753 = vmatprep.subr.bf16.mxu0 %v2356
        %2754 = vmatpush2.bf16.msra.mxu0 %v2355
        %2755 = vmatprep.subr.bf16.mxu0 %v2350
        %2756 = vmatpush2.bf16.msra.mxu0 %v2349
        %2757 = vmatprep.subr.bf16.mxu0 %v2344
        %2758 = vmatpush2.bf16.msra.mxu0 %v2343
        %2759 = vmatprep.subr.bf16.mxu0 %v2338
        %2760 = vmatpush2.bf16.msra.mxu0 %v2337
        %2761 = vmatprep.subr.bf16.mxu0 %v2332
        %2762 = vmatpush2.bf16.msra.mxu0 %v2331
        %2763 = vmatprep.subr.bf16.mxu0 %v2326
        %2764 = vmatpush2.bf16.msra.mxu0 %v2325
        %2765 = vmatprep.subr.bf16.mxu0 %v2320
        %2766 = vmatpush2.bf16.msra.mxu0 %v2319
        %2767 = vmatprep.mubr.bf16.mxu0 %v1466
        %2768 = vmatmul.mubr.bf16.gmra.mxu0 %v1465
        %v2769 = vpop.f32.mrf.mxu0
        %v2770 = vadd.f32 %v1674, %v2769
        %v2771 = vpop.f32.mrf.mxu0
        %v2772 = vadd.f32 %v1678, %v2771
        %v2773 = vpop.f32.mrf.mxu0
        %v2774 = vpop.f32.mrf.mxu0
        %2775 = vdwg.mxu0
        %2776 = vmatprep.subr.bf16.mxu0 %v2410
        %2777 = vmatpush1.bf16.msra.mxu0 %v2409
        %2778 = vmatprep.subr.bf16.mxu0 %v2404
        %2779 = vmatpush1.bf16.msra.mxu0 %v2403
        %2780 = vmatprep.subr.bf16.mxu0 %v2398
        %2781 = vmatpush1.bf16.msra.mxu0 %v2397
        %2782 = vmatprep.subr.bf16.mxu0 %v2392
        %2783 = vmatpush1.bf16.msra.mxu0 %v2391
        %2784 = vmatprep.subr.bf16.mxu0 %v2386
        %2785 = vmatpush1.bf16.msra.mxu0 %v2385
        %2786 = vmatprep.subr.bf16.mxu0 %v2380
        %2787 = vmatpush1.bf16.msra.mxu0 %v2379
        %2788 = vmatprep.subr.bf16.mxu0 %v2374
        %2789 = vmatpush1.bf16.msra.mxu0 %v2373
        %2790 = vmatprep.subr.bf16.mxu0 %v2368
        %2791 = vmatpush1.bf16.msra.mxu0 %v2367
        %2792 = vmatprep.subr.bf16.mxu0 %v2458
        %2793 = vmatpush2.bf16.msra.mxu0 %v2457
        %2794 = vmatprep.subr.bf16.mxu0 %v2452
        %2795 = vmatpush2.bf16.msra.mxu0 %v2451
        %2796 = vmatprep.subr.bf16.mxu0 %v2446
        %2797 = vmatpush2.bf16.msra.mxu0 %v2445
        %2798 = vmatprep.subr.bf16.mxu0 %v2440
        %2799 = vmatpush2.bf16.msra.mxu0 %v2439
        %2800 = vmatprep.subr.bf16.mxu0 %v2434
        %2801 = vmatpush2.bf16.msra.mxu0 %v2433
        %2802 = vmatprep.subr.bf16.mxu0 %v2428
        %2803 = vmatpush2.bf16.msra.mxu0 %v2427
        %2804 = vmatprep.subr.bf16.mxu0 %v2422
        %2805 = vmatpush2.bf16.msra.mxu0 %v2421
        %2806 = vmatprep.subr.bf16.mxu0 %v2416
        %2807 = vmatpush2.bf16.msra.mxu0 %v2415
        %2808 = vmatprep.mubr.bf16.mxu0 %v1468
        %2809 = vmatmul.mubr.bf16.gmra.mxu0 %v1467
        %v2810 = vpop.f32.mrf.mxu0
        %v2811 = vadd.f32 %v2770, %v2810
        %v2812 = vpop.f32.mrf.mxu0
        %v2813 = vadd.f32 %v2772, %v2812
        %v2814 = vpop.f32.mrf.mxu0
        %v2815 = vpop.f32.mrf.mxu0
        %2816 = vdwg.mxu0
        %2817 = vmatprep.subr.bf16.mxu0 %v2316
        %2818 = vmatpush1.bf16.msra.mxu0 %v2315
        %2819 = vmatprep.subr.bf16.mxu0 %v2310
        %2820 = vmatpush1.bf16.msra.mxu0 %v2309
        %2821 = vmatprep.subr.bf16.mxu0 %v2304
        %2822 = vmatpush1.bf16.msra.mxu0 %v2303
        %2823 = vmatprep.subr.bf16.mxu0 %v2298
        %2824 = vmatpush1.bf16.msra.mxu0 %v2297
        %2825 = vmatprep.subr.bf16.mxu0 %v2292
        %2826 = vmatpush1.bf16.msra.mxu0 %v2291
        %2827 = vmatprep.subr.bf16.mxu0 %v2286
        %2828 = vmatpush1.bf16.msra.mxu0 %v2285
        %2829 = vmatprep.subr.bf16.mxu0 %v2280
        %2830 = vmatpush1.bf16.msra.mxu0 %v2279
        %2831 = vmatprep.subr.bf16.mxu0 %v2274
        %2832 = vmatpush1.bf16.msra.mxu0 %v2273
        %2833 = vmatprep.subr.bf16.mxu0 %v2364
        %2834 = vmatpush2.bf16.msra.mxu0 %v2363
        %2835 = vmatprep.subr.bf16.mxu0 %v2358
        %2836 = vmatpush2.bf16.msra.mxu0 %v2357
        %2837 = vmatprep.subr.bf16.mxu0 %v2352
        %2838 = vmatpush2.bf16.msra.mxu0 %v2351
        %2839 = vmatprep.subr.bf16.mxu0 %v2346
        %2840 = vmatpush2.bf16.msra.mxu0 %v2345
        %2841 = vmatprep.subr.bf16.mxu0 %v2340
        %2842 = vmatpush2.bf16.msra.mxu0 %v2339
        %2843 = vmatprep.subr.bf16.mxu0 %v2334
        %2844 = vmatpush2.bf16.msra.mxu0 %v2333
        %2845 = vmatprep.subr.bf16.mxu0 %v2328
        %2846 = vmatpush2.bf16.msra.mxu0 %v2327
        %2847 = vmatprep.subr.bf16.mxu0 %v2322
        %2848 = vmatpush2.bf16.msra.mxu0 %v2321
        %2849 = vmatprep.mubr.bf16.mxu0 %v1466
        %2850 = vmatmul.mubr.bf16.gmra.mxu0 %v1465
        %v2851 = vpop.f32.mrf.mxu0
        %v2852 = vadd.f32 %v1682, %v2851
        %v2853 = vpop.f32.mrf.mxu0
        %v2854 = vadd.f32 %v1686, %v2853
        %v2855 = vpop.f32.mrf.mxu0
        %v2856 = vpop.f32.mrf.mxu0
        %2857 = vdwg.mxu0
        %2858 = vmatprep.subr.bf16.mxu0 %v2412
        %2859 = vmatpush1.bf16.msra.mxu0 %v2411
        %2860 = vmatprep.subr.bf16.mxu0 %v2406
        %2861 = vmatpush1.bf16.msra.mxu0 %v2405
        %2862 = vmatprep.subr.bf16.mxu0 %v2400
        %2863 = vmatpush1.bf16.msra.mxu0 %v2399
        %2864 = vmatprep.subr.bf16.mxu0 %v2394
        %2865 = vmatpush1.bf16.msra.mxu0 %v2393
        %2866 = vmatprep.subr.bf16.mxu0 %v2388
        %2867 = vmatpush1.bf16.msra.mxu0 %v2387
        %2868 = vmatprep.subr.bf16.mxu0 %v2382
        %2869 = vmatpush1.bf16.msra.mxu0 %v2381
        %2870 = vmatprep.subr.bf16.mxu0 %v2376
        %2871 = vmatpush1.bf16.msra.mxu0 %v2375
        %2872 = vmatprep.subr.bf16.mxu0 %v2370
        %2873 = vmatpush1.bf16.msra.mxu0 %v2369
        %2874 = vmatprep.subr.bf16.mxu0 %v2460
        %2875 = vmatpush2.bf16.msra.mxu0 %v2459
        %2876 = vmatprep.subr.bf16.mxu0 %v2454
        %2877 = vmatpush2.bf16.msra.mxu0 %v2453
        %2878 = vmatprep.subr.bf16.mxu0 %v2448
        %2879 = vmatpush2.bf16.msra.mxu0 %v2447
        %2880 = vmatprep.subr.bf16.mxu0 %v2442
        %2881 = vmatpush2.bf16.msra.mxu0 %v2441
        %2882 = vmatprep.subr.bf16.mxu0 %v2436
        %2883 = vmatpush2.bf16.msra.mxu0 %v2435
        %2884 = vmatprep.subr.bf16.mxu0 %v2430
        %2885 = vmatpush2.bf16.msra.mxu0 %v2429
        %2886 = vmatprep.subr.bf16.mxu0 %v2424
        %2887 = vmatpush2.bf16.msra.mxu0 %v2423
        %2888 = vmatprep.subr.bf16.mxu0 %v2418
        %2889 = vmatpush2.bf16.msra.mxu0 %v2417
        %2890 = vmatprep.mubr.bf16.mxu0 %v1468
        %2891 = vmatmul.mubr.bf16.gmra.mxu0 %v1467
        %v2892 = vpop.f32.mrf.mxu0
        %v2893 = vadd.f32 %v2852, %v2892
        %v2894 = vpop.f32.mrf.mxu0
        %v2895 = vadd.f32 %v2854, %v2894
        %v2896 = vpop.f32.mrf.mxu0
        %v2897 = vpop.f32.mrf.mxu0
        %2898 = vdwg.mxu0
        %v2905 = vcombine.low %v2729, %v2731
        %v2906 = vcombine.low %v2811, %v2813
        %v2907 = vcombine.low %v2893, %v2895
        %2911 = vst [vmem:[%s428] sm:$0x77] %v2905
        %2912 = vst [vmem:[%s428 + $0x8] sm:$0x77] %v2906
        %2913 = vst [vmem:[%s428 + $0x10] sm:$0x77] %v2907
      $region52: #{forward.1} parent=43 // pred_fallthru
        _
      %p2914 = scmp.lt.s32.totalorder %s19, 2
      %s2915 = scalar_select %p2914, %s19, 2
      %p2916 = scmp.lt.s32.totalorder %s2915, 2
      %s2917 = scalar_select %p2916, %s2915, 2
      %s2918 = smul.addr %s2917, 6
      %s2919 = smul.addr %s2918, 4
      %s2920 = scalar_lea.vmem %s7, %s2919
      // Predicated region
      $region53: #{forward.1} parent=43 // pred_check
        %p2921 = pneg %p203
      $region54: #{forward.1} parent=43 // pred_check_branch
        %2923 = sbr.rel (%p2921) target = $region56
      $region55: #{forward.1} parent=43 // pred_region
        _
      $region56: #{forward.1} parent=43 // pred_fallthru
        _
      // Predicated region
      $region57: #{forward.1} parent=43 // pred_check
        %p2924 = pneg %p233
      $region58: #{forward.1} parent=43 // pred_check_branch
        %2926 = sbr.rel (%p2924) target = $region60
      $region59: #{forward.1} parent=43 // pred_region
        %p2927 = scmp.lt.s32.totalorder %s19, 2
        %s2928 = scalar_select %p2927, %s19, 2
      $region60: #{forward.1} parent=43 // pred_fallthru
        _
      // Predicated region
      $region61: #{forward.1} parent=43 // pred_check
        %p2929 = pneg %p203
      $region62: #{forward.1} parent=43 // pred_check_branch
        %2931 = sbr.rel (%p2929) target = $region64
      $region63: #{forward.1} parent=43 // pred_region
        _
      $region64: #{forward.1} parent=43 // pred_fallthru
        _
    $region44: #{forward.1} parent=5 // pred_fallthru
      _
    %p2932 = scmp.le.s32.totalorder 2, %s14
    // Predicated region
    $region65: #{forward.1} parent=5 // pred_check
      %p2933 = pneg %p2932
    $region66: #{forward.1} parent=5 // pred_check_branch
      %2935 = sbr.rel (%p2933) target = $region68
    $region67: #{forward.1} parent=5 // pred_region
      %s2936 = ssub.s32 %s14, 2
      // Predicated region
      $region69: #{forward.1} parent=67 // pred_check
        %p2937 = pneg %p239
      $region70: #{forward.1} parent=67 // pred_check_branch
        %2939 = sbr.rel (%p2937) target = $region72
      $region71: #{forward.1} parent=67 // pred_region
        %p2940 = scmp.lt.s32.totalorder %s20, 2
        %s2941 = scalar_select %p2940, %s20, 2
        %p2942 = scmp.lt.s32.totalorder %s2941, 2
        %s2943 = scalar_select %p2942, %s2941, 2
        %s2944 = smul.addr %s2943, 6
        %s2945 = smul.addr %s2944, 4
        %s2946 = scalar_lea.vmem %s7, %s2945
      $region72: #{forward.1} parent=67 // pred_fallthru
        _
    $region68: #{forward.1} parent=5 // pred_fallthru
      _
  $region6: #{forward.1} parent=0 // loop_footer
    %s18 = sadd.s32 1, %s14
  $region7: #{forward.1} parent=0 // loop_footer_branch
    %13 = sbr.rel target = $region3
  $region8: #{forward.1} parent=0 // loop_exit
    _

</llo_original>
